<compile_context>
chip_gen: v5e
topology: v5e:2x2
jax: 0.10.0
libtpu: 0.0.40
codegen_flags: <defaults>
</compile_context>

<pallas_src>
import functools
import math

import jax
import jax.numpy as jnp
from jax.experimental import pallas as pl
from jax.experimental.pallas import tpu as pltpu


# ----------------------------------------------------------------------------
# Kernel 1: fused self-attention + output projection + residual + LayerNorm1
#   per (batch) grid step:  x (1, L, E), mask (1, 1, Lk)
# ----------------------------------------------------------------------------
def _attn_block_kernel(x_ref, mask_ref, wqkv_ref, wo_ref, bo_ref, g_ref, b_ref,
                       o_ref, *, heads, scale, eps):
    x = x_ref[0]                                   # (L, E) f32
    L, E = x.shape
    Dh = E // heads

    # Fused QKV projection: one (L, E) x (E, 3E) MXU matmul, bf16 in / f32 acc.
    qkv = jnp.dot(x.astype(jnp.bfloat16), wqkv_ref[...],
                  preferred_element_type=jnp.float32)      # (L, 3E)
    q = qkv[:, :E]
    k = qkv[:, E:2 * E]
    v = qkv[:, 2 * E:]

    mask = mask_ref[0]                             # (1, Lk) float 0/1, shared across heads

    # Per-head attention; output projection folded in as an accumulation so no
    # lane-dim concat is needed:  out = sum_h (att_h @ V_h) @ Wo[h*Dh:(h+1)*Dh, :]
    acc = jnp.zeros((L, E), jnp.float32)
    for h in range(heads):
        qh = q[:, h * Dh:(h + 1) * Dh]
        kh = k[:, h * Dh:(h + 1) * Dh]
        vh = v[:, h * Dh:(h + 1) * Dh]
        energy = jax.lax.dot_general(
            qh.astype(jnp.bfloat16), kh.astype(jnp.bfloat16),
            dimension_numbers=(((1,), (1,)), ((), ())),
            preferred_element_type=jnp.float32)            # (L, Lk)
        # Faithful to torch source: masked_fill(mask == 0, -1e-20) BEFORE scaling.
        energy = jnp.where(mask == 0.0, jnp.float32(-1e-20), energy)
        e = energy * scale
        e = e - jnp.max(e, axis=-1, keepdims=True)
        p = jnp.exp(e)
        att = p * pl.reciprocal(jnp.sum(p, axis=-1, keepdims=True), approx=True)
        oh = jnp.dot(att.astype(jnp.bfloat16), vh.astype(jnp.bfloat16),
                     preferred_element_type=jnp.float32)   # (L, Dh)
        acc = acc + jnp.dot(oh.astype(jnp.bfloat16),
                            wo_ref[h * Dh:(h + 1) * Dh, :],
                            preferred_element_type=jnp.float32)

    attn_out = acc + bo_ref[...]                   # fc_out bias

    # Fused residual + LayerNorm1   (dropout p -> identity at inference)
    y = attn_out + x
    mean = jnp.mean(y, axis=-1, keepdims=True)
    var = jnp.mean(jnp.square(y - mean), axis=-1, keepdims=True)
    o_ref[0] = (y - mean) * jax.lax.rsqrt(var + eps) * g_ref[...] + b_ref[...]


def fused_attention_ln(x, mask3, p, heads, eps=1e-5):
    """LN1(SelfAttention(x, x, x, mask) + x) for every batch element."""
    N, L, E = x.shape
    Lk = mask3.shape[-1]
    scale = 1.0 / math.sqrt(E // heads)
    return pl.pallas_call(
        functools.partial(_attn_block_kernel, heads=heads, scale=scale, eps=eps),
        out_shape=jax.ShapeDtypeStruct((N, L, E), jnp.float32),
        grid=(N,),
        in_specs=[
            pl.BlockSpec((1, L, E), lambda n: (n, 0, 0)),
            pl.BlockSpec((1, 1, Lk), lambda n: (n, 0, 0)),   # one mask block per batch, reused by all heads
            pl.BlockSpec((E, 3 * E), lambda n: (0, 0)),      # resident weight blocks
            pl.BlockSpec((E, E), lambda n: (0, 0)),
            pl.BlockSpec((1, E), lambda n: (0, 0)),
            pl.BlockSpec((1, E), lambda n: (0, 0)),
            pl.BlockSpec((1, E), lambda n: (0, 0)),
        ],
        out_specs=pl.BlockSpec((1, L, E), lambda n: (n, 0, 0)),
        compiler_params=pltpu.CompilerParams(dimension_semantics=("parallel",)),
    )(x, mask3, p["wqkv"], p["wo"], p["bo"], p["ln1_g"], p["ln1_b"])


# ----------------------------------------------------------------------------
# Kernel 2: fused FFN (Linear -> ReLU -> Linear) + residual + LayerNorm2
#   gridded over row tiles of the flattened (tokens, E) slab
# ----------------------------------------------------------------------------
def _ffn_ln_kernel(x_ref, w1_ref, b1_ref, w2_ref, b2_ref, g_ref, b_ref, o_ref, *, eps):
    x = x_ref[...]                                           # (tm, E) f32
    h = jnp.dot(x.astype(jnp.bfloat16), w1_ref[...],
                preferred_element_type=jnp.float32) + b1_ref[...]
    h = jnp.maximum(h, 0.0)
    f = jnp.dot(h.astype(jnp.bfloat16), w2_ref[...],
                preferred_element_type=jnp.float32) + b2_ref[...]
    y = f + x                                                # fused residual
    mean = jnp.mean(y, axis=-1, keepdims=True)
    var = jnp.mean(jnp.square(y - mean), axis=-1, keepdims=True)
    o_ref[...] = (y - mean) * jax.lax.rsqrt(var + eps) * g_ref[...] + b_ref[...]


def _row_tile(M):
    # prefer >=2 grid steps (megacore on v7x), rows multiple of 8 (sublane tiling)
    for t in (256, 128, 64, 32, 16, 8):
        if M % t == 0 and M // t >= 2:
            return t
    for t in (256, 128, 64, 32, 16, 8):
        if M % t == 0:
            return t
    return M


def fused_ffn_ln(x2d, p, eps=1e-5):
    """LN2(FFN(x) + x) on a flattened (tokens, E) slab."""
    M, E = x2d.shape
    F = p["w1"].shape[1]
    tm = _row_tile(M)
    return pl.pallas_call(
        functools.partial(_ffn_ln_kernel, eps=eps),
        out_shape=jax.ShapeDtypeStruct((M, E), jnp.float32),
        grid=(M // tm,),
        in_specs=[
            pl.BlockSpec((tm, E), lambda i: (i, 0)),
            pl.BlockSpec((E, F), lambda i: (0, 0)),
            pl.BlockSpec((1, F), lambda i: (0, 0)),
            pl.BlockSpec((F, E), lambda i: (0, 0)),
            pl.BlockSpec((1, E), lambda i: (0, 0)),
            pl.BlockSpec((1, E), lambda i: (0, 0)),
            pl.BlockSpec((1, E), lambda i: (0, 0)),
        ],
        out_specs=pl.BlockSpec((tm, E), lambda i: (i, 0)),
        compiler_params=pltpu.CompilerParams(dimension_semantics=("parallel",)),
    )(x2d, p["w1"], p["b1"], p["w2"], p["b2"], p["ln2_g"], p["ln2_b"])


# ----------------------------------------------------------------------------
# Encoder forward (mirrors the PyTorch module; dropout -> identity)
# ----------------------------------------------------------------------------
def encoder_forward(p, src_ids, mask, heads):
    N, L = src_ids.shape
    # TODO(synk): embedding gathers stay as JAX glue (no clean Pallas equivalent at this size).
    x = p["tok_emb"][src_ids] + p["pos_emb"][jnp.arange(L)][None, :, :]
    x = x.astype(jnp.float32)
    mask3 = mask.reshape(N, 1, -1).astype(jnp.float32)       # (N, 1, Lk), no per-head copies
    for lp in p["layers"]:
        x1 = fused_attention_ln(x, mask3, lp, heads)                   # LN1(attn(x)+x)
        x = fused_ffn_ln(x1.reshape(N * L, -1), lp).reshape(N, L, -1)  # LN2(FFN(x1)+x1)
    return x


# ----------------------------------------------------------------------------
# Deterministic parameter init (shapes follow the PyTorch __init__;
# linear weights pre-transposed once to (Kin, Kout) and stored in bf16)
# ----------------------------------------------------------------------------
def init_params(key, src_vocab, E, num_layers, fexp, max_len):
    keys = iter(jax.random.split(key, 256))

    def nrm(shape, scale=0.02):
        return (scale * jax.random.normal(next(keys), shape)).astype(jnp.float32)

    F = fexp * E

    def layer_p():
        wq, wk, wv = nrm((E, E)), nrm((E, E)), nrm((E, E))
        return dict(
            wqkv=jnp.concatenate([wq, wk, wv], axis=1).astype(jnp.bfloat16),  # (E, 3E)
            wo=nrm((E, E)).astype(jnp.bfloat16),                              # (E, E)
            bo=jnp.zeros((1, E), jnp.float32),
            ln1_g=jnp.ones((1, E), jnp.float32), ln1_b=jnp.zeros((1, E), jnp.float32),
            w1=nrm((E, F)).astype(jnp.bfloat16), b1=jnp.zeros((1, F), jnp.float32),
            w2=nrm((F, E)).astype(jnp.bfloat16), b2=jnp.zeros((1, E), jnp.float32),
            ln2_g=jnp.ones((1, E), jnp.float32), ln2_b=jnp.zeros((1, E), jnp.float32),
        )

    return dict(tok_emb=nrm((src_vocab, E), 1.0),
                pos_emb=nrm((max_len, E), 1.0),
                layers=[layer_p() for _ in range(num_layers)])


# ----------------------------------------------------------------------------
if __name__ == "__main__":
    N, L = 2, 8
    E, H, NUM_LAYERS, FEXP, MAX_LEN = 32, 4, 2, 2, 16
    SRC_VOCAB = 50
    SRC_PAD_IDX = 0

    root = jax.random.PRNGKey(0)
    kp, ks = jax.random.split(root)
    params = init_params(kp, SRC_VOCAB, E, NUM_LAYERS, FEXP, MAX_LEN)

    src = jax.random.randint(ks, (N, L), 1, SRC_VOCAB, dtype=jnp.int32)
    src = src.at[0, -1].set(SRC_PAD_IDX)                       # exercise the padding mask
    src_mask = (src != SRC_PAD_IDX).astype(jnp.float32)[:, None, None, :]  # (N,1,1,L)

    fwd = jax.jit(lambda p, s, m: encoder_forward(p, s, m, H))
    out = fwd(params, src, src_mask)
    jax.block_until_ready(out)

    assert out.shape == (N, L, E), out.shape
    assert bool(jnp.all(jnp.isfinite(out)))
    print("KERNEL_OK")
</pallas_src>

<mosaic_0001>
module attributes {stable_mosaic.version = 11 : i64} {
  func.func @_ffn_ln_kernel(%arg0: i32, %arg1: memref<8x32xf32, #tpu.memory_space<vmem>>, %arg2: memref<32x64xbf16, #tpu.memory_space<vmem>>, %arg3: memref<1x64xf32, #tpu.memory_space<vmem>>, %arg4: memref<64x32xbf16, #tpu.memory_space<vmem>>, %arg5: memref<1x32xf32, #tpu.memory_space<vmem>>, %arg6: memref<1x32xf32, #tpu.memory_space<vmem>>, %arg7: memref<1x32xf32, #tpu.memory_space<vmem>>, %arg8: memref<8x32xf32, #tpu.memory_space<vmem>>) attributes {dimension_semantics = [#tpu.dimension_semantics<parallel>], iteration_bounds = array<i64: 2>, scalar_prefetch = 0 : i64, scratch_operands = 0 : i64, tpu.core_type = #tpu.core_type<tc>, window_params = [{transform_indices = @transform_0, window_bounds = array<i64: 8, 32>}, {pipeline_mode = #tpu.pipeline_mode<synchronous>, transform_indices = @transform_1, window_bounds = array<i64: 32, 64>}, {pipeline_mode = #tpu.pipeline_mode<synchronous>, transform_indices = @transform_2, window_bounds = array<i64: 1, 64>}, {pipeline_mode = #tpu.pipeline_mode<synchronous>, transform_indices = @transform_3, window_bounds = array<i64: 64, 32>}, {pipeline_mode = #tpu.pipeline_mode<synchronous>, transform_indices = @transform_4, window_bounds = array<i64: 1, 32>}, {pipeline_mode = #tpu.pipeline_mode<synchronous>, transform_indices = @transform_5, window_bounds = array<i64: 1, 32>}, {pipeline_mode = #tpu.pipeline_mode<synchronous>, transform_indices = @transform_6, window_bounds = array<i64: 1, 32>}, {transform_indices = @transform_7, window_bounds = array<i64: 8, 32>}]} {
    %c0 = arith.constant 0 : index
    %c0_0 = arith.constant 0 : index
    %0 = vector.load %arg1[%c0, %c0_0] : memref<8x32xf32, #tpu.memory_space<vmem>>, vector<8x32xf32>
    %1 = arith.truncf %0 : vector<8x32xf32> to vector<8x32xbf16>
    %c0_1 = arith.constant 0 : index
    %c0_2 = arith.constant 0 : index
    %2 = vector.load %arg2[%c0_1, %c0_2] : memref<32x64xbf16, #tpu.memory_space<vmem>>, vector<32x64xbf16>
    %cst = arith.constant dense<0.000000e+00> : vector<8x64xf32>
    %3 = tpu.matmul %1, %2, %cst {dimension_numbers = #tpu.dot_dimension_numbers<[1], [0], [0], [1], [0, 0, 1, 1], [], []>} : vector<8x32xbf16>, vector<32x64xbf16>, vector<8x64xf32> -> vector<8x64xf32>
    %c0_3 = arith.constant 0 : index
    %c0_4 = arith.constant 0 : index
    %4 = vector.load %arg3[%c0_3, %c0_4] : memref<1x64xf32, #tpu.memory_space<vmem>>, vector<1x64xf32>
    %5 = vector.broadcast %4 : vector<1x64xf32> to vector<8x64xf32>
    %6 = arith.addf %3, %5 : vector<8x64xf32>
    %cst_5 = arith.constant 0.000000e+00 : f32
    %7 = vector.broadcast %cst_5 : f32 to vector<8x64xf32>
    %8 = arith.maximumf %6, %7 : vector<8x64xf32>
    %9 = arith.truncf %8 : vector<8x64xf32> to vector<8x64xbf16>
    %c0_6 = arith.constant 0 : index
    %c0_7 = arith.constant 0 : index
    %10 = vector.load %arg4[%c0_6, %c0_7] : memref<64x32xbf16, #tpu.memory_space<vmem>>, vector<64x32xbf16>
    %cst_8 = arith.constant dense<0.000000e+00> : vector<8x32xf32>
    %11 = tpu.matmul %9, %10, %cst_8 {dimension_numbers = #tpu.dot_dimension_numbers<[1], [0], [0], [1], [0, 0, 1, 1], [], []>} : vector<8x64xbf16>, vector<64x32xbf16>, vector<8x32xf32> -> vector<8x32xf32>
    %c0_9 = arith.constant 0 : index
    %c0_10 = arith.constant 0 : index
    %12 = vector.load %arg5[%c0_9, %c0_10] : memref<1x32xf32, #tpu.memory_space<vmem>>, vector<1x32xf32>
    %13 = vector.broadcast %12 : vector<1x32xf32> to vector<8x32xf32>
    %14 = arith.addf %11, %13 : vector<8x32xf32>
    %15 = arith.addf %14, %0 : vector<8x32xf32>
    %cst_11 = arith.constant dense<0.000000e+00> : vector<8xf32>
    %16 = vector.multi_reduction <add>, %15, %cst_11 [1] : vector<8x32xf32> to vector<8xf32>
    %17 = vector.shape_cast %16 : vector<8xf32> to vector<8x1xf32>
    %cst_12 = arith.constant 3.200000e+01 : f32
    %18 = vector.broadcast %cst_12 : f32 to vector<8x1xf32>
    %19 = arith.divf %17, %18 : vector<8x1xf32>
    %20 = vector.broadcast %19 : vector<8x1xf32> to vector<8x32xf32>
    %21 = arith.subf %15, %20 : vector<8x32xf32>
    %22 = arith.mulf %21, %21 : vector<8x32xf32>
    %cst_13 = arith.constant dense<0.000000e+00> : vector<8xf32>
    %23 = vector.multi_reduction <add>, %22, %cst_13 [1] : vector<8x32xf32> to vector<8xf32>
    %24 = vector.shape_cast %23 : vector<8xf32> to vector<8x1xf32>
    %cst_14 = arith.constant 3.200000e+01 : f32
    %25 = vector.broadcast %cst_14 : f32 to vector<8x1xf32>
    %26 = arith.divf %24, %25 : vector<8x1xf32>
    %27 = vector.broadcast %19 : vector<8x1xf32> to vector<8x32xf32>
    %28 = arith.subf %15, %27 : vector<8x32xf32>
    %cst_15 = arith.constant 9.99999974E-6 : f32
    %29 = vector.broadcast %cst_15 : f32 to vector<8x1xf32>
    %30 = arith.addf %26, %29 : vector<8x1xf32>
    %31 = math.rsqrt %30 : vector<8x1xf32>
    %32 = vector.broadcast %31 : vector<8x1xf32> to vector<8x32xf32>
    %33 = arith.mulf %28, %32 : vector<8x32xf32>
    %c0_16 = arith.constant 0 : index
    %c0_17 = arith.constant 0 : index
    %34 = vector.load %arg6[%c0_16, %c0_17] : memref<1x32xf32, #tpu.memory_space<vmem>>, vector<1x32xf32>
    %35 = vector.broadcast %34 : vector<1x32xf32> to vector<8x32xf32>
    %36 = arith.mulf %33, %35 : vector<8x32xf32>
    %c0_18 = arith.constant 0 : index
    %c0_19 = arith.constant 0 : index
    %37 = vector.load %arg7[%c0_18, %c0_19] : memref<1x32xf32, #tpu.memory_space<vmem>>, vector<1x32xf32>
    %38 = vector.broadcast %37 : vector<1x32xf32> to vector<8x32xf32>
    %39 = arith.addf %36, %38 : vector<8x32xf32>
    %c0_20 = arith.constant 0 : index
    %c0_21 = arith.constant 0 : index
    %40 = vector.load %arg8[%c0_20, %c0_21] : memref<8x32xf32, #tpu.memory_space<vmem>>, vector<8x32xf32>
    tpu.vector_store %arg8[%c0_20, %c0_21], %39 {strides = array<i32>} : memref<8x32xf32, #tpu.memory_space<vmem>>, vector<8x32xf32>,
    return
  }
  func.func @transform_0(%arg0: i32) -> (i32, i32) {
    %c0_i32 = arith.constant 0 : i32
    %c0_i32_0 = arith.constant 0 : i32
    return %arg0, %c0_i32 : i32, i32
  }
  func.func @transform_1(%arg0: i32) -> (i32, i32) {
    %c0_i32 = arith.constant 0 : i32
    %c0_i32_0 = arith.constant 0 : i32
    %c0_i32_1 = arith.constant 0 : i32
    return %c0_i32, %c0_i32_0 : i32, i32
  }
  func.func @transform_2(%arg0: i32) -> (i32, i32) {
    %c0_i32 = arith.constant 0 : i32
    %c0_i32_0 = arith.constant 0 : i32
    %c0_i32_1 = arith.constant 0 : i32
    return %c0_i32, %c0_i32_0 : i32, i32
  }
  func.func @transform_3(%arg0: i32) -> (i32, i32) {
    %c0_i32 = arith.constant 0 : i32
    %c0_i32_0 = arith.constant 0 : i32
    %c0_i32_1 = arith.constant 0 : i32
    return %c0_i32, %c0_i32_0 : i32, i32
  }
  func.func @transform_4(%arg0: i32) -> (i32, i32) {
    %c0_i32 = arith.constant 0 : i32
    %c0_i32_0 = arith.constant 0 : i32
    %c0_i32_1 = arith.constant 0 : i32
    return %c0_i32, %c0_i32_0 : i32, i32
  }
  func.func @transform_5(%arg0: i32) -> (i32, i32) {
    %c0_i32 = arith.constant 0 : i32
    %c0_i32_0 = arith.constant 0 : i32
    %c0_i32_1 = arith.constant 0 : i32
    return %c0_i32, %c0_i32_0 : i32, i32
  }
  func.func @transform_6(%arg0: i32) -> (i32, i32) {
    %c0_i32 = arith.constant 0 : i32
    %c0_i32_0 = arith.constant 0 : i32
    %c0_i32_1 = arith.constant 0 : i32
    return %c0_i32, %c0_i32_0 : i32, i32
  }
  func.func @transform_7(%arg0: i32) -> (i32, i32) {
    %c0_i32 = arith.constant 0 : i32
    %c0_i32_0 = arith.constant 0 : i32
    return %arg0, %c0_i32 : i32, i32
  }
}

module attributes {stable_mosaic.version = 11 : i64} {
  func.func @_attn_block_kernel(%arg0: i32, %arg1: memref<1x8x32xf32, #tpu.memory_space<vmem>>, %arg2: memref<1x1x8xf32, #tpu.memory_space<vmem>>, %arg3: memref<32x96xbf16, #tpu.memory_space<vmem>>, %arg4: memref<32x32xbf16, #tpu.memory_space<vmem>>, %arg5: memref<1x32xf32, #tpu.memory_space<vmem>>, %arg6: memref<1x32xf32, #tpu.memory_space<vmem>>, %arg7: memref<1x32xf32, #tpu.memory_space<vmem>>, %arg8: memref<1x8x32xf32, #tpu.memory_space<vmem>>) attributes {dimension_semantics = [#tpu.dimension_semantics<parallel>], iteration_bounds = array<i64: 2>, scalar_prefetch = 0 : i64, scratch_operands = 0 : i64, tpu.core_type = #tpu.core_type<tc>, window_params = [{transform_indices = @transform_0, window_bounds = array<i64: 1, 8, 32>}, {transform_indices = @transform_1, window_bounds = array<i64: 1, 1, 8>}, {pipeline_mode = #tpu.pipeline_mode<synchronous>, transform_indices = @transform_2, window_bounds = array<i64: 32, 96>}, {pipeline_mode = #tpu.pipeline_mode<synchronous>, transform_indices = @transform_3, window_bounds = array<i64: 32, 32>}, {pipeline_mode = #tpu.pipeline_mode<synchronous>, transform_indices = @transform_4, window_bounds = array<i64: 1, 32>}, {pipeline_mode = #tpu.pipeline_mode<synchronous>, transform_indices = @transform_5, window_bounds = array<i64: 1, 32>}, {pipeline_mode = #tpu.pipeline_mode<synchronous>, transform_indices = @transform_6, window_bounds = array<i64: 1, 32>}, {transform_indices = @transform_7, window_bounds = array<i64: 1, 8, 32>}]} {
    %c0 = arith.constant 0 : index
    %c0_0 = arith.constant 0 : index
    %c0_1 = arith.constant 0 : index
    %0 = vector.load %arg1[%c0, %c0_0, %c0_1] : memref<1x8x32xf32, #tpu.memory_space<vmem>>, vector<1x8x32xf32>
    %1 = vector.shape_cast %0 : vector<1x8x32xf32> to vector<8x32xf32>
    %2 = arith.truncf %1 : vector<8x32xf32> to vector<8x32xbf16>
    %c0_2 = arith.constant 0 : index
    %c0_3 = arith.constant 0 : index
    %3 = vector.load %arg3[%c0_2, %c0_3] : memref<32x96xbf16, #tpu.memory_space<vmem>>, vector<32x96xbf16>
    %cst = arith.constant dense<0.000000e+00> : vector<8x96xf32>
    %4 = tpu.matmul %2, %3, %cst {dimension_numbers = #tpu.dot_dimension_numbers<[1], [0], [0], [1], [0, 0, 1, 1], [], []>} : vector<8x32xbf16>, vector<32x96xbf16>, vector<8x96xf32> -> vector<8x96xf32>
    %5 = vector.extract_strided_slice %4 {offsets = [0, 0], sizes = [8, 32], strides = [1, 1]} : vector<8x96xf32> to vector<8x32xf32>
    %6 = vector.extract_strided_slice %4 {offsets = [0, 32], sizes = [8, 32], strides = [1, 1]} : vector<8x96xf32> to vector<8x32xf32>
    %7 = vector.extract_strided_slice %4 {offsets = [0, 64], sizes = [8, 32], strides = [1, 1]} : vector<8x96xf32> to vector<8x32xf32>
    %c0_4 = arith.constant 0 : index
    %c0_5 = arith.constant 0 : index
    %c0_6 = arith.constant 0 : index
    %8 = vector.load %arg2[%c0_4, %c0_5, %c0_6] : memref<1x1x8xf32, #tpu.memory_space<vmem>>, vector<1x1x8xf32>
    %9 = vector.shape_cast %8 : vector<1x1x8xf32> to vector<1x8xf32>
    %cst_7 = arith.constant 0.000000e+00 : f32
    %10 = vector.broadcast %cst_7 : f32 to vector<8x32xf32>
    %11 = vector.extract_strided_slice %5 {offsets = [0, 0], sizes = [8, 8], strides = [1, 1]} : vector<8x32xf32> to vector<8x8xf32>
    %12 = vector.extract_strided_slice %6 {offsets = [0, 0], sizes = [8, 8], strides = [1, 1]} : vector<8x32xf32> to vector<8x8xf32>
    %13 = vector.extract_strided_slice %7 {offsets = [0, 0], sizes = [8, 8], strides = [1, 1]} : vector<8x32xf32> to vector<8x8xf32>
    %14 = arith.truncf %11 : vector<8x8xf32> to vector<8x8xbf16>
    %15 = arith.truncf %12 : vector<8x8xf32> to vector<8x8xbf16>
    %cst_8 = arith.constant dense<0.000000e+00> : vector<8x8xf32>
    %16 = tpu.matmul %14, %15, %cst_8 {dimension_numbers = #tpu.dot_dimension_numbers<[1], [1], [0], [0], [0, 0, 1, 0], [], []>} : vector<8x8xbf16>, vector<8x8xbf16>, vector<8x8xf32> -> vector<8x8xf32>
    %cst_9 = arith.constant 0.000000e+00 : f32
    %17 = vector.broadcast %cst_9 : f32 to vector<1x8xf32>
    %18 = arith.cmpf oeq, %9, %17 : vector<1x8xf32>
    %cst_10 = arith.constant -9.99999968E-21 : f32
    %19 = vector.shape_cast %18 : vector<1x8xi1> to vector<1x8xi1>
    %20 = vector.broadcast %19 : vector<1x8xi1> to vector<8x8xi1>
    %21 = vector.broadcast %cst_10 : f32 to vector<8x8xf32>
    %22 = arith.select %20, %21, %16 : vector<8x8xi1>, vector<8x8xf32>
    %cst_11 = arith.constant 0.353553385 : f32
    %23 = vector.broadcast %cst_11 : f32 to vector<8x8xf32>
    %24 = arith.mulf %22, %23 : vector<8x8xf32>
    %cst_12 = arith.constant dense<0xFF800000> : vector<8xf32>
    %25 = vector.multi_reduction <maximumf>, %24, %cst_12 [1] : vector<8x8xf32> to vector<8xf32>
    %26 = vector.shape_cast %25 : vector<8xf32> to vector<8x1xf32>
    %27 = vector.broadcast %26 : vector<8x1xf32> to vector<8x8xf32>
    %28 = arith.subf %24, %27 : vector<8x8xf32>
    %29 = math.exp %28 : vector<8x8xf32>
    %cst_13 = arith.constant dense<0.000000e+00> : vector<8xf32>
    %30 = vector.multi_reduction <add>, %29, %cst_13 [1] : vector<8x8xf32> to vector<8xf32>
    %31 = vector.shape_cast %30 : vector<8xf32> to vector<8x1xf32>
    %32 = tpu.reciprocal %31 {approx = true} : vector<8x1xf32> -> vector<8x1xf32>
    %33 = vector.broadcast %32 : vector<8x1xf32> to vector<8x8xf32>
    %34 = arith.mulf %29, %33 : vector<8x8xf32>
    %35 = arith.truncf %34 : vector<8x8xf32> to vector<8x8xbf16>
    %36 = arith.truncf %13 : vector<8x8xf32> to vector<8x8xbf16>
    %cst_14 = arith.constant dense<0.000000e+00> : vector<8x8xf32>
    %37 = tpu.matmul %35, %36, %cst_14 {dimension_numbers = #tpu.dot_dimension_numbers<[1], [0], [0], [1], [0, 0, 1, 1], [], []>} : vector<8x8xbf16>, vector<8x8xbf16>, vector<8x8xf32> -> vector<8x8xf32>
    %38 = arith.truncf %37 : vector<8x8xf32> to vector<8x8xbf16>
    %c0_15 = arith.constant 0 : index
    %c0_16 = arith.constant 0 : index
    %39 = vector.load %arg4[%c0_15, %c0_16] : memref<32x32xbf16, #tpu.memory_space<vmem>>, vector<8x32xbf16>
    %cst_17 = arith.constant dense<0.000000e+00> : vector<8x32xf32>
    %40 = tpu.matmul %38, %39, %cst_17 {dimension_numbers = #tpu.dot_dimension_numbers<[1], [0], [0], [1], [0, 0, 1, 1], [], []>} : vector<8x8xbf16>, vector<8x32xbf16>, vector<8x32xf32> -> vector<8x32xf32>
    %41 = arith.addf %10, %40 : vector<8x32xf32>
    %42 = vector.extract_strided_slice %5 {offsets = [0, 8], sizes = [8, 8], strides = [1, 1]} : vector<8x32xf32> to vector<8x8xf32>
    %43 = vector.extract_strided_slice %6 {offsets = [0, 8], sizes = [8, 8], strides = [1, 1]} : vector<8x32xf32> to vector<8x8xf32>
    %44 = vector.extract_strided_slice %7 {offsets = [0, 8], sizes = [8, 8], strides = [1, 1]} : vector<8x32xf32> to vector<8x8xf32>
    %45 = arith.truncf %42 : vector<8x8xf32> to vector<8x8xbf16>
    %46 = arith.truncf %43 : vector<8x8xf32> to vector<8x8xbf16>
    %cst_18 = arith.constant dense<0.000000e+00> : vector<8x8xf32>
    %47 = tpu.matmul %45, %46, %cst_18 {dimension_numbers = #tpu.dot_dimension_numbers<[1], [1], [0], [0], [0, 0, 1, 0], [], []>} : vector<8x8xbf16>, vector<8x8xbf16>, vector<8x8xf32> -> vector<8x8xf32>
    %cst_19 = arith.constant 0.000000e+00 : f32
    %48 = vector.broadcast %cst_19 : f32 to vector<1x8xf32>
    %49 = arith.cmpf oeq, %9, %48 : vector<1x8xf32>
    %cst_20 = arith.constant -9.99999968E-21 : f32
    %50 = vector.shape_cast %49 : vector<1x8xi1> to vector<1x8xi1>
    %51 = vector.broadcast %50 : vector<1x8xi1> to vector<8x8xi1>
    %52 = vector.broadcast %cst_20 : f32 to vector<8x8xf32>
    %53 = arith.select %51, %52, %47 : vector<8x8xi1>, vector<8x8xf32>
    %cst_21 = arith.constant 0.353553385 : f32
    %54 = vector.broadcast %cst_21 : f32 to vector<8x8xf32>
    %55 = arith.mulf %53, %54 : vector<8x8xf32>
    %cst_22 = arith.constant dense<0xFF800000> : vector<8xf32>
    %56 = vector.multi_reduction <maximumf>, %55, %cst_22 [1] : vector<8x8xf32> to vector<8xf32>
    %57 = vector.shape_cast %56 : vector<8xf32> to vector<8x1xf32>
    %58 = vector.broadcast %57 : vector<8x1xf32> to vector<8x8xf32>
    %59 = arith.subf %55, %58 : vector<8x8xf32>
    %60 = math.exp %59 : vector<8x8xf32>
    %cst_23 = arith.constant dense<0.000000e+00> : vector<8xf32>
    %61 = vector.multi_reduction <add>, %60, %cst_23 [1] : vector<8x8xf32> to vector<8xf32>
    %62 = vector.shape_cast %61 : vector<8xf32> to vector<8x1xf32>
    %63 = tpu.reciprocal %62 {approx = true} : vector<8x1xf32> -> vector<8x1xf32>
    %64 = vector.broadcast %63 : vector<8x1xf32> to vector<8x8xf32>
    %65 = arith.mulf %60, %64 : vector<8x8xf32>
    %66 = arith.truncf %65 : vector<8x8xf32> to vector<8x8xbf16>
    %67 = arith.truncf %44 : vector<8x8xf32> to vector<8x8xbf16>
    %cst_24 = arith.constant dense<0.000000e+00> : vector<8x8xf32>
    %68 = tpu.matmul %66, %67, %cst_24 {dimension_numbers = #tpu.dot_dimension_numbers<[1], [0], [0], [1], [0, 0, 1, 1], [], []>} : vector<8x8xbf16>, vector<8x8xbf16>, vector<8x8xf32> -> vector<8x8xf32>
    %69 = arith.truncf %68 : vector<8x8xf32> to vector<8x8xbf16>
    %c8 = arith.constant 8 : index
    %c0_25 = arith.constant 0 : index
    %70 = vector.load %arg4[%c8, %c0_25] : memref<32x32xbf16, #tpu.memory_space<vmem>>, vector<8x32xbf16>
    %cst_26 = arith.constant dense<0.000000e+00> : vector<8x32xf32>
    %71 = tpu.matmul %69, %70, %cst_26 {dimension_numbers = #tpu.dot_dimension_numbers<[1], [0], [0], [1], [0, 0, 1, 1], [], []>} : vector<8x8xbf16>, vector<8x32xbf16>, vector<8x32xf32> -> vector<8x32xf32>
    %72 = arith.addf %41, %71 : vector<8x32xf32>
    %73 = vector.extract_strided_slice %5 {offsets = [0, 16], sizes = [8, 8], strides = [1, 1]} : vector<8x32xf32> to vector<8x8xf32>
    %74 = vector.extract_strided_slice %6 {offsets = [0, 16], sizes = [8, 8], strides = [1, 1]} : vector<8x32xf32> to vector<8x8xf32>
    %75 = vector.extract_strided_slice %7 {offsets = [0, 16], sizes = [8, 8], strides = [1, 1]} : vector<8x32xf32> to vector<8x8xf32>
    %76 = arith.truncf %73 : vector<8x8xf32> to vector<8x8xbf16>
    %77 = arith.truncf %74 : vector<8x8xf32> to vector<8x8xbf16>
    %cst_27 = arith.constant dense<0.000000e+00> : vector<8x8xf32>
    %78 = tpu.matmul %76, %77, %cst_27 {dimension_numbers = #tpu.dot_dimension_numbers<[1], [1], [0], [0], [0, 0, 1, 0], [], []>} : vector<8x8xbf16>, vector<8x8xbf16>, vector<8x8xf32> -> vector<8x8xf32>
    %cst_28 = arith.constant 0.000000e+00 : f32
    %79 = vector.broadcast %cst_28 : f32 to vector<1x8xf32>
    %80 = arith.cmpf oeq, %9, %79 : vector<1x8xf32>
    %cst_29 = arith.constant -9.99999968E-21 : f32
    %81 = vector.shape_cast %80 : vector<1x8xi1> to vector<1x8xi1>
    %82 = vector.broadcast %81 : vector<1x8xi1> to vector<8x8xi1>
    %83 = vector.broadcast %cst_29 : f32 to vector<8x8xf32>
    %84 = arith.select %82, %83, %78 : vector<8x8xi1>, vector<8x8xf32>
    %cst_30 = arith.constant 0.353553385 : f32
    %85 = vector.broadcast %cst_30 : f32 to vector<8x8xf32>
    %86 = arith.mulf %84, %85 : vector<8x8xf32>
    %cst_31 = arith.constant dense<0xFF800000> : vector<8xf32>
    %87 = vector.multi_reduction <maximumf>, %86, %cst_31 [1] : vector<8x8xf32> to vector<8xf32>
    %88 = vector.shape_cast %87 : vector<8xf32> to vector<8x1xf32>
    %89 = vector.broadcast %88 : vector<8x1xf32> to vector<8x8xf32>
    %90 = arith.subf %86, %89 : vector<8x8xf32>
    %91 = math.exp %90 : vector<8x8xf32>
    %cst_32 = arith.constant dense<0.000000e+00> : vector<8xf32>
    %92 = vector.multi_reduction <add>, %91, %cst_32 [1] : vector<8x8xf32> to vector<8xf32>
    %93 = vector.shape_cast %92 : vector<8xf32> to vector<8x1xf32>
    %94 = tpu.reciprocal %93 {approx = true} : vector<8x1xf32> -> vector<8x1xf32>
    %95 = vector.broadcast %94 : vector<8x1xf32> to vector<8x8xf32>
    %96 = arith.mulf %91, %95 : vector<8x8xf32>
    %97 = arith.truncf %96 : vector<8x8xf32> to vector<8x8xbf16>
    %98 = arith.truncf %75 : vector<8x8xf32> to vector<8x8xbf16>
    %cst_33 = arith.constant dense<0.000000e+00> : vector<8x8xf32>
    %99 = tpu.matmul %97, %98, %cst_33 {dimension_numbers = #tpu.dot_dimension_numbers<[1], [0], [0], [1], [0, 0, 1, 1], [], []>} : vector<8x8xbf16>, vector<8x8xbf16>, vector<8x8xf32> -> vector<8x8xf32>
    %100 = arith.truncf %99 : vector<8x8xf32> to vector<8x8xbf16>
    %c16 = arith.constant 16 : index
    %c0_34 = arith.constant 0 : index
    %101 = vector.load %arg4[%c16, %c0_34] : memref<32x32xbf16, #tpu.memory_space<vmem>>, vector<8x32xbf16>
    %cst_35 = arith.constant dense<0.000000e+00> : vector<8x32xf32>
    %102 = tpu.matmul %100, %101, %cst_35 {dimension_numbers = #tpu.dot_dimension_numbers<[1], [0], [0], [1], [0, 0, 1, 1], [], []>} : vector<8x8xbf16>, vector<8x32xbf16>, vector<8x32xf32> -> vector<8x32xf32>
    %103 = arith.addf %72, %102 : vector<8x32xf32>
    %104 = vector.extract_strided_slice %5 {offsets = [0, 24], sizes = [8, 8], strides = [1, 1]} : vector<8x32xf32> to vector<8x8xf32>
    %105 = vector.extract_strided_slice %6 {offsets = [0, 24], sizes = [8, 8], strides = [1, 1]} : vector<8x32xf32> to vector<8x8xf32>
    %106 = vector.extract_strided_slice %7 {offsets = [0, 24], sizes = [8, 8], strides = [1, 1]} : vector<8x32xf32> to vector<8x8xf32>
    %107 = arith.truncf %104 : vector<8x8xf32> to vector<8x8xbf16>
    %108 = arith.truncf %105 : vector<8x8xf32> to vector<8x8xbf16>
    %cst_36 = arith.constant dense<0.000000e+00> : vector<8x8xf32>
    %109 = tpu.matmul %107, %108, %cst_36 {dimension_numbers = #tpu.dot_dimension_numbers<[1], [1], [0], [0], [0, 0, 1, 0], [], []>} : vector<8x8xbf16>, vector<8x8xbf16>, vector<8x8xf32> -> vector<8x8xf32>
    %cst_37 = arith.constant 0.000000e+00 : f32
    %110 = vector.broadcast %cst_37 : f32 to vector<1x8xf32>
    %111 = arith.cmpf oeq, %9, %110 : vector<1x8xf32>
    %cst_38 = arith.constant -9.99999968E-21 : f32
    %112 = vector.shape_cast %111 : vector<1x8xi1> to vector<1x8xi1>
    %113 = vector.broadcast %112 : vector<1x8xi1> to vector<8x8xi1>
    %114 = vector.broadcast %cst_38 : f32 to vector<8x8xf32>
    %115 = arith.select %113, %114, %109 : vector<8x8xi1>, vector<8x8xf32>
    %cst_39 = arith.constant 0.353553385 : f32
    %116 = vector.broadcast %cst_39 : f32 to vector<8x8xf32>
    %117 = arith.mulf %115, %116 : vector<8x8xf32>
    %cst_40 = arith.constant dense<0xFF800000> : vector<8xf32>
    %118 = vector.multi_reduction <maximumf>, %117, %cst_40 [1] : vector<8x8xf32> to vector<8xf32>
    %119 = vector.shape_cast %118 : vector<8xf32> to vector<8x1xf32>
    %120 = vector.broadcast %119 : vector<8x1xf32> to vector<8x8xf32>
    %121 = arith.subf %117, %120 : vector<8x8xf32>
    %122 = math.exp %121 : vector<8x8xf32>
    %cst_41 = arith.constant dense<0.000000e+00> : vector<8xf32>
    %123 = vector.multi_reduction <add>, %122, %cst_41 [1] : vector<8x8xf32> to vector<8xf32>
    %124 = vector.shape_cast %123 : vector<8xf32> to vector<8x1xf32>
    %125 = tpu.reciprocal %124 {approx = true} : vector<8x1xf32> -> vector<8x1xf32>
    %126 = vector.broadcast %125 : vector<8x1xf32> to vector<8x8xf32>
    %127 = arith.mulf %122, %126 : vector<8x8xf32>
    %128 = arith.truncf %127 : vector<8x8xf32> to vector<8x8xbf16>
    %129 = arith.truncf %106 : vector<8x8xf32> to vector<8x8xbf16>
    %cst_42 = arith.constant dense<0.000000e+00> : vector<8x8xf32>
    %130 = tpu.matmul %128, %129, %cst_42 {dimension_numbers = #tpu.dot_dimension_numbers<[1], [0], [0], [1], [0, 0, 1, 1], [], []>} : vector<8x8xbf16>, vector<8x8xbf16>, vector<8x8xf32> -> vector<8x8xf32>
    %131 = arith.truncf %130 : vector<8x8xf32> to vector<8x8xbf16>
    %c24 = arith.constant 24 : index
    %c0_43 = arith.constant 0 : index
    %132 = vector.load %arg4[%c24, %c0_43] : memref<32x32xbf16, #tpu.memory_space<vmem>>, vector<8x32xbf16>
    %cst_44 = arith.constant dense<0.000000e+00> : vector<8x32xf32>
    %133 = tpu.matmul %131, %132, %cst_44 {dimension_numbers = #tpu.dot_dimension_numbers<[1], [0], [0], [1], [0, 0, 1, 1], [], []>} : vector<8x8xbf16>, vector<8x32xbf16>, vector<8x32xf32> -> vector<8x32xf32>
    %134 = arith.addf %103, %133 : vector<8x32xf32>
    %c0_45 = arith.constant 0 : index
    %c0_46 = arith.constant 0 : index
    %135 = vector.load %arg5[%c0_45, %c0_46] : memref<1x32xf32, #tpu.memory_space<vmem>>, vector<1x32xf32>
    %136 = vector.broadcast %135 : vector<1x32xf32> to vector<8x32xf32>
    %137 = arith.addf %134, %136 : vector<8x32xf32>
    %138 = arith.addf %137, %1 : vector<8x32xf32>
    %cst_47 = arith.constant dense<0.000000e+00> : vector<8xf32>
    %139 = vector.multi_reduction <add>, %138, %cst_47 [1] : vector<8x32xf32> to vector<8xf32>
    %140 = vector.shape_cast %139 : vector<8xf32> to vector<8x1xf32>
    %cst_48 = arith.constant 3.200000e+01 : f32
    %141 = vector.broadcast %cst_48 : f32 to vector<8x1xf32>
    %142 = arith.divf %140, %141 : vector<8x1xf32>
    %143 = vector.broadcast %142 : vector<8x1xf32> to vector<8x32xf32>
    %144 = arith.subf %138, %143 : vector<8x32xf32>
    %145 = arith.mulf %144, %144 : vector<8x32xf32>
    %cst_49 = arith.constant dense<0.000000e+00> : vector<8xf32>
    %146 = vector.multi_reduction <add>, %145, %cst_49 [1] : vector<8x32xf32> to vector<8xf32>
    %147 = vector.shape_cast %146 : vector<8xf32> to vector<8x1xf32>
    %cst_50 = arith.constant 3.200000e+01 : f32
    %148 = vector.broadcast %cst_50 : f32 to vector<8x1xf32>
    %149 = arith.divf %147, %148 : vector<8x1xf32>
    %150 = vector.broadcast %142 : vector<8x1xf32> to vector<8x32xf32>
    %151 = arith.subf %138, %150 : vector<8x32xf32>
    %cst_51 = arith.constant 9.99999974E-6 : f32
    %152 = vector.broadcast %cst_51 : f32 to vector<8x1xf32>
    %153 = arith.addf %149, %152 : vector<8x1xf32>
    %154 = math.rsqrt %153 : vector<8x1xf32>
    %155 = vector.broadcast %154 : vector<8x1xf32> to vector<8x32xf32>
    %156 = arith.mulf %151, %155 : vector<8x32xf32>
    %c0_52 = arith.constant 0 : index
    %c0_53 = arith.constant 0 : index
    %157 = vector.load %arg6[%c0_52, %c0_53] : memref<1x32xf32, #tpu.memory_space<vmem>>, vector<1x32xf32>
    %158 = vector.broadcast %157 : vector<1x32xf32> to vector<8x32xf32>
    %159 = arith.mulf %156, %158 : vector<8x32xf32>
    %c0_54 = arith.constant 0 : index
    %c0_55 = arith.constant 0 : index
    %160 = vector.load %arg7[%c0_54, %c0_55] : memref<1x32xf32, #tpu.memory_space<vmem>>, vector<1x32xf32>
    %161 = vector.broadcast %160 : vector<1x32xf32> to vector<8x32xf32>
    %162 = arith.addf %159, %161 : vector<8x32xf32>
    %c0_56 = arith.constant 0 : index
    %c0_57 = arith.constant 0 : index
    %c0_58 = arith.constant 0 : index
    %163 = vector.load %arg8[%c0_56, %c0_57, %c0_58] : memref<1x8x32xf32, #tpu.memory_space<vmem>>, vector<1x8x32xf32>
    %164 = vector.shape_cast %163 : vector<1x8x32xf32> to vector<8x32xf32>
    %165 = vector.shape_cast %162 : vector<8x32xf32> to vector<1x8x32xf32>
    tpu.vector_store %arg8[%c0_56, %c0_57, %c0_58], %165 {strides = array<i32>} : memref<1x8x32xf32, #tpu.memory_space<vmem>>, vector<1x8x32xf32>,
    return
  }
  func.func @transform_0(%arg0: i32) -> (i32, i32, i32) {
    %c0_i32 = arith.constant 0 : i32
    %c0_i32_0 = arith.constant 0 : i32
    %c0_i32_1 = arith.constant 0 : i32
    return %arg0, %c0_i32, %c0_i32_0 : i32, i32, i32
  }
  func.func @transform_1(%arg0: i32) -> (i32, i32, i32) {
    %c0_i32 = arith.constant 0 : i32
    %c0_i32_0 = arith.constant 0 : i32
    %c0_i32_1 = arith.constant 0 : i32
    return %arg0, %c0_i32, %c0_i32_0 : i32, i32, i32
  }
  func.func @transform_2(%arg0: i32) -> (i32, i32) {
    %c0_i32 = arith.constant 0 : i32
    %c0_i32_0 = arith.constant 0 : i32
    %c0_i32_1 = arith.constant 0 : i32
    return %c0_i32, %c0_i32_0 : i32, i32
  }
  func.func @transform_3(%arg0: i32) -> (i32, i32) {
    %c0_i32 = arith.constant 0 : i32
    %c0_i32_0 = arith.constant 0 : i32
    %c0_i32_1 = arith.constant 0 : i32
    return %c0_i32, %c0_i32_0 : i32, i32
  }
  func.func @transform_4(%arg0: i32) -> (i32, i32) {
    %c0_i32 = arith.constant 0 : i32
    %c0_i32_0 = arith.constant 0 : i32
    %c0_i32_1 = arith.constant 0 : i32
    return %c0_i32, %c0_i32_0 : i32, i32
  }
  func.func @transform_5(%arg0: i32) -> (i32, i32) {
    %c0_i32 = arith.constant 0 : i32
    %c0_i32_0 = arith.constant 0 : i32
    %c0_i32_1 = arith.constant 0 : i32
    return %c0_i32, %c0_i32_0 : i32, i32
  }
  func.func @transform_6(%arg0: i32) -> (i32, i32) {
    %c0_i32 = arith.constant 0 : i32
    %c0_i32_0 = arith.constant 0 : i32
    %c0_i32_1 = arith.constant 0 : i32
    return %c0_i32, %c0_i32_0 : i32, i32
  }
  func.func @transform_7(%arg0: i32) -> (i32, i32, i32) {
    %c0_i32 = arith.constant 0 : i32
    %c0_i32_0 = arith.constant 0 : i32
    %c0_i32_1 = arith.constant 0 : i32
    return %arg0, %c0_i32, %c0_i32_0 : i32, i32, i32
  }
}

module attributes {stable_mosaic.version = 11 : i64} {
  func.func @_ffn_ln_kernel(%arg0: i32, %arg1: memref<8x32xf32, #tpu.memory_space<vmem>>, %arg2: memref<32x64xbf16, #tpu.memory_space<vmem>>, %arg3: memref<1x64xf32, #tpu.memory_space<vmem>>, %arg4: memref<64x32xbf16, #tpu.memory_space<vmem>>, %arg5: memref<1x32xf32, #tpu.memory_space<vmem>>, %arg6: memref<1x32xf32, #tpu.memory_space<vmem>>, %arg7: memref<1x32xf32, #tpu.memory_space<vmem>>, %arg8: memref<8x32xf32, #tpu.memory_space<vmem>>) attributes {dimension_semantics = [#tpu.dimension_semantics<parallel>], iteration_bounds = array<i64: 2>, scalar_prefetch = 0 : i64, scratch_operands = 0 : i64, tpu.core_type = #tpu.core_type<tc>, window_params = [{transform_indices = @transform_0, window_bounds = array<i64: 8, 32>}, {pipeline_mode = #tpu.pipeline_mode<synchronous>, transform_indices = @transform_1, window_bounds = array<i64: 32, 64>}, {pipeline_mode = #tpu.pipeline_mode<synchronous>, transform_indices = @transform_2, window_bounds = array<i64: 1, 64>}, {pipeline_mode = #tpu.pipeline_mode<synchronous>, transform_indices = @transform_3, window_bounds = array<i64: 64, 32>}, {pipeline_mode = #tpu.pipeline_mode<synchronous>, transform_indices = @transform_4, window_bounds = array<i64: 1, 32>}, {pipeline_mode = #tpu.pipeline_mode<synchronous>, transform_indices = @transform_5, window_bounds = array<i64: 1, 32>}, {pipeline_mode = #tpu.pipeline_mode<synchronous>, transform_indices = @transform_6, window_bounds = array<i64: 1, 32>}, {transform_indices = @transform_7, window_bounds = array<i64: 8, 32>}]} {
    %c0 = arith.constant 0 : index
    %c0_0 = arith.constant 0 : index
    %0 = vector.load %arg1[%c0, %c0_0] : memref<8x32xf32, #tpu.memory_space<vmem>>, vector<8x32xf32>
    %1 = arith.truncf %0 : vector<8x32xf32> to vector<8x32xbf16>
    %c0_1 = arith.constant 0 : index
    %c0_2 = arith.constant 0 : index
    %2 = vector.load %arg2[%c0_1, %c0_2] : memref<32x64xbf16, #tpu.memory_space<vmem>>, vector<32x64xbf16>
    %cst = arith.constant dense<0.000000e+00> : vector<8x64xf32>
    %3 = tpu.matmul %1, %2, %cst {dimension_numbers = #tpu.dot_dimension_numbers<[1], [0], [0], [1], [0, 0, 1, 1], [], []>} : vector<8x32xbf16>, vector<32x64xbf16>, vector<8x64xf32> -> vector<8x64xf32>
    %c0_3 = arith.constant 0 : index
    %c0_4 = arith.constant 0 : index
    %4 = vector.load %arg3[%c0_3, %c0_4] : memref<1x64xf32, #tpu.memory_space<vmem>>, vector<1x64xf32>
    %5 = vector.broadcast %4 : vector<1x64xf32> to vector<8x64xf32>
    %6 = arith.addf %3, %5 : vector<8x64xf32>
    %cst_5 = arith.constant 0.000000e+00 : f32
    %7 = vector.broadcast %cst_5 : f32 to vector<8x64xf32>
    %8 = arith.maximumf %6, %7 : vector<8x64xf32>
    %9 = arith.truncf %8 : vector<8x64xf32> to vector<8x64xbf16>
    %c0_6 = arith.constant 0 : index
    %c0_7 = arith.constant 0 : index
    %10 = vector.load %arg4[%c0_6, %c0_7] : memref<64x32xbf16, #tpu.memory_space<vmem>>, vector<64x32xbf16>
    %cst_8 = arith.constant dense<0.000000e+00> : vector<8x32xf32>
    %11 = tpu.matmul %9, %10, %cst_8 {dimension_numbers = #tpu.dot_dimension_numbers<[1], [0], [0], [1], [0, 0, 1, 1], [], []>} : vector<8x64xbf16>, vector<64x32xbf16>, vector<8x32xf32> -> vector<8x32xf32>
    %c0_9 = arith.constant 0 : index
    %c0_10 = arith.constant 0 : index
    %12 = vector.load %arg5[%c0_9, %c0_10] : memref<1x32xf32, #tpu.memory_space<vmem>>, vector<1x32xf32>
    %13 = vector.broadcast %12 : vector<1x32xf32> to vector<8x32xf32>
    %14 = arith.addf %11, %13 : vector<8x32xf32>
    %15 = arith.addf %14, %0 : vector<8x32xf32>
    %cst_11 = arith.constant dense<0.000000e+00> : vector<8xf32>
    %16 = vector.multi_reduction <add>, %15, %cst_11 [1] : vector<8x32xf32> to vector<8xf32>
    %17 = vector.shape_cast %16 : vector<8xf32> to vector<8x1xf32>
    %cst_12 = arith.constant 3.200000e+01 : f32
    %18 = vector.broadcast %cst_12 : f32 to vector<8x1xf32>
    %19 = arith.divf %17, %18 : vector<8x1xf32>
    %20 = vector.broadcast %19 : vector<8x1xf32> to vector<8x32xf32>
    %21 = arith.subf %15, %20 : vector<8x32xf32>
    %22 = arith.mulf %21, %21 : vector<8x32xf32>
    %cst_13 = arith.constant dense<0.000000e+00> : vector<8xf32>
    %23 = vector.multi_reduction <add>, %22, %cst_13 [1] : vector<8x32xf32> to vector<8xf32>
    %24 = vector.shape_cast %23 : vector<8xf32> to vector<8x1xf32>
    %cst_14 = arith.constant 3.200000e+01 : f32
    %25 = vector.broadcast %cst_14 : f32 to vector<8x1xf32>
    %26 = arith.divf %24, %25 : vector<8x1xf32>
    %27 = vector.broadcast %19 : vector<8x1xf32> to vector<8x32xf32>
    %28 = arith.subf %15, %27 : vector<8x32xf32>
    %cst_15 = arith.constant 9.99999974E-6 : f32
    %29 = vector.broadcast %cst_15 : f32 to vector<8x1xf32>
    %30 = arith.addf %26, %29 : vector<8x1xf32>
    %31 = math.rsqrt %30 : vector<8x1xf32>
    %32 = vector.broadcast %31 : vector<8x1xf32> to vector<8x32xf32>
    %33 = arith.mulf %28, %32 : vector<8x32xf32>
    %c0_16 = arith.constant 0 : index
    %c0_17 = arith.constant 0 : index
    %34 = vector.load %arg6[%c0_16, %c0_17] : memref<1x32xf32, #tpu.memory_space<vmem>>, vector<1x32xf32>
    %35 = vector.broadcast %34 : vector<1x32xf32> to vector<8x32xf32>
    %36 = arith.mulf %33, %35 : vector<8x32xf32>
    %c0_18 = arith.constant 0 : index
    %c0_19 = arith.constant 0 : index
    %37 = vector.load %arg7[%c0_18, %c0_19] : memref<1x32xf32, #tpu.memory_space<vmem>>, vector<1x32xf32>
    %38 = vector.broadcast %37 : vector<1x32xf32> to vector<8x32xf32>
    %39 = arith.addf %36, %38 : vector<8x32xf32>
    %c0_20 = arith.constant 0 : index
    %c0_21 = arith.constant 0 : index
    %40 = vector.load %arg8[%c0_20, %c0_21] : memref<8x32xf32, #tpu.memory_space<vmem>>, vector<8x32xf32>
    tpu.vector_store %arg8[%c0_20, %c0_21], %39 {strides = array<i32>} : memref<8x32xf32, #tpu.memory_space<vmem>>, vector<8x32xf32>,
    return
  }
  func.func @transform_0(%arg0: i32) -> (i32, i32) {
    %c0_i32 = arith.constant 0 : i32
    %c0_i32_0 = arith.constant 0 : i32
    return %arg0, %c0_i32 : i32, i32
  }
  func.func @transform_1(%arg0: i32) -> (i32, i32) {
    %c0_i32 = arith.constant 0 : i32
    %c0_i32_0 = arith.constant 0 : i32
    %c0_i32_1 = arith.constant 0 : i32
    return %c0_i32, %c0_i32_0 : i32, i32
  }
  func.func @transform_2(%arg0: i32) -> (i32, i32) {
    %c0_i32 = arith.constant 0 : i32
    %c0_i32_0 = arith.constant 0 : i32
    %c0_i32_1 = arith.constant 0 : i32
    return %c0_i32, %c0_i32_0 : i32, i32
  }
  func.func @transform_3(%arg0: i32) -> (i32, i32) {
    %c0_i32 = arith.constant 0 : i32
    %c0_i32_0 = arith.constant 0 : i32
    %c0_i32_1 = arith.constant 0 : i32
    return %c0_i32, %c0_i32_0 : i32, i32
  }
  func.func @transform_4(%arg0: i32) -> (i32, i32) {
    %c0_i32 = arith.constant 0 : i32
    %c0_i32_0 = arith.constant 0 : i32
    %c0_i32_1 = arith.constant 0 : i32
    return %c0_i32, %c0_i32_0 : i32, i32
  }
  func.func @transform_5(%arg0: i32) -> (i32, i32) {
    %c0_i32 = arith.constant 0 : i32
    %c0_i32_0 = arith.constant 0 : i32
    %c0_i32_1 = arith.constant 0 : i32
    return %c0_i32, %c0_i32_0 : i32, i32
  }
  func.func @transform_6(%arg0: i32) -> (i32, i32) {
    %c0_i32 = arith.constant 0 : i32
    %c0_i32_0 = arith.constant 0 : i32
    %c0_i32_1 = arith.constant 0 : i32
    return %c0_i32, %c0_i32_0 : i32, i32
  }
  func.func @transform_7(%arg0: i32) -> (i32, i32) {
    %c0_i32 = arith.constant 0 : i32
    %c0_i32_0 = arith.constant 0 : i32
    return %arg0, %c0_i32 : i32, i32
  }
}

</mosaic_0001>

<llo_original>
// kernel: _lambda_.5
$region0: #{_lambda_.5}
  #allocation0 [shape = 'u32[]', space=smem, size = 0x4, offset = 0x4, fixed_abs, tag = 'smem constant byte address 0x4 - core index']
  #allocation1 [shape = 'u32[72,128]{1,0:T(1,128)}', space=vmem, size = 0x9000, scoped, tag = 'internal scratch']
  %s0 = inlined_call_operand.vmem [shape: f32[16,32], index: 0, kind: input, shape index: {}]
  %s1 = inlined_call_operand.vmem [shape: bf16[32,64], index: 1, kind: input, shape index: {}]
  %s2 = inlined_call_operand.vmem [shape: f32[1,64], index: 2, kind: input, shape index: {}]
  %s3 = inlined_call_operand.vmem [shape: bf16[64,32], index: 3, kind: input, shape index: {}]
  %s4 = inlined_call_operand.vmem [shape: f32[1,32], index: 4, kind: input, shape index: {}]
  %s5 = inlined_call_operand.vmem [shape: f32[1,32], index: 5, kind: input, shape index: {}]
  %s6 = inlined_call_operand.vmem [shape: f32[1,32], index: 6, kind: input, shape index: {}]
  %s7 = inlined_call_operand.vmem [shape: f32[16,32], index: 7, kind: output, shape index: {}]
  %s8 = sld [smem:[#allocation0]]
  $region61: #{_lambda_.5} parent=0
    _
  %s10 = ssub.s32 1, %s8
  %s11 = scalar_select 0, %s10, %s8
  loop: start=0, step=1, limit=4
  $region2: #{_lambda_.5} parent=0 // loop_pre_header
    _
  $region3: #{_lambda_.5} parent=0 // loop_header
    %s13 = sphi 0, %s17
    %p14 = scmp.ge.s32.totalorder %s13, 4
    %s23 = sphi 0, %s25
    %s26 = sphi 0, %s23
    %s27 = sphi 0, %s26
    %s43 = sphi 0, %s27
    %s47 = sphi 0, %s47
    %s49 = sphi 0, %s47
    %s50 = sphi 0, %s49
    %s64 = sphi 0, %s50
    %s68 = sphi 0, %s68
    %s70 = sphi 0, %s68
    %s71 = sphi 0, %s70
    %s85 = sphi 0, %s71
    %s89 = sphi 0, %s89
    %s91 = sphi 0, %s89
    %s92 = sphi 0, %s91
    %s106 = sphi 0, %s92
    %s110 = sphi 0, %s110
    %s112 = sphi 0, %s110
    %s113 = sphi 0, %s112
    %s127 = sphi 0, %s113
    %s131 = sphi 0, %s131
    %s133 = sphi 0, %s131
    %s134 = sphi 0, %s133
    %s148 = sphi 0, %s134
    %s152 = sphi 0, %s152
    %s154 = sphi 0, %s152
    %s155 = sphi 0, %s154
    %s169 = sphi 0, %s155
    %s175 = sphi 0, %s177
    %s178 = sphi 0, %s175
    %s179 = sphi 0, %s178
    %s195 = sphi 0, %s179
  $region4: #{_lambda_.5} parent=0 // loop_header_branch
    %16 = sbr.rel (%p14) target = $region8
  $region5: #{_lambda_.5} parent=0 // loop_body
    %s18 = ssub.s32 %s13, 1
    %s19 = ssub.s32 %s13, 2
    %s20 = sadd.s32 %s13, 1
    %s21 = ssub.s32 %s13, %s20
    %p22 = scmp.eq.s32.totalorder %s21, 0
    %s24 = sadd.s32 %s23, 1
    %s25 = scalar_select %p22, %s23, %s24
    %p28 = pneg %p22
    %p29 = scmp.eq.s32.totalorder %s13, 1
    %p30 = por %p28, %p29
    %p31 = scmp.ne.s32.totalorder %s23, %s26
    %p32 = scmp.eq.s32.totalorder %s13, 0
    %p33 = por %p31, %p32
    %p34 = scmp.ne.s32.totalorder %s23, %s26
    %p35 = scmp.eq.s32.totalorder %s18, 1
    %p36 = por %p34, %p35
    %p37 = scmp.ne.s32.totalorder %s26, %s27
    %p38 = scmp.eq.s32.totalorder %s18, 0
    %p39 = por %p37, %p38
    %p40 = scmp.ne.s32.totalorder %s26, %s27
    %p41 = scmp.eq.s32.totalorder %s19, 1
    %p42 = por %p40, %p41
    %p44 = scmp.ne.s32.totalorder %s27, %s43
    %p45 = scmp.eq.s32.totalorder %s19, 0
    %p46 = por %p44, %p45
    %s48 = sadd.s32 %s47, 1
    %p51 = scmp.eq.s32.totalorder %s13, 1
    %p52 = scmp.ne.s32.totalorder %s47, %s49
    %p53 = scmp.eq.s32.totalorder %s13, 0
    %p54 = por %p52, %p53
    %p55 = scmp.ne.s32.totalorder %s47, %s49
    %p56 = scmp.eq.s32.totalorder %s18, 1
    %p57 = por %p55, %p56
    %p58 = scmp.ne.s32.totalorder %s49, %s50
    %p59 = scmp.eq.s32.totalorder %s18, 0
    %p60 = por %p58, %p59
    %p61 = scmp.ne.s32.totalorder %s49, %s50
    %p62 = scmp.eq.s32.totalorder %s19, 1
    %p63 = por %p61, %p62
    %p65 = scmp.ne.s32.totalorder %s50, %s64
    %p66 = scmp.eq.s32.totalorder %s19, 0
    %p67 = por %p65, %p66
    %s69 = sadd.s32 %s68, 1
    %p72 = scmp.eq.s32.totalorder %s13, 1
    %p73 = scmp.ne.s32.totalorder %s68, %s70
    %p74 = scmp.eq.s32.totalorder %s13, 0
    %p75 = por %p73, %p74
    %p76 = scmp.ne.s32.totalorder %s68, %s70
    %p77 = scmp.eq.s32.totalorder %s18, 1
    %p78 = por %p76, %p77
    %p79 = scmp.ne.s32.totalorder %s70, %s71
    %p80 = scmp.eq.s32.totalorder %s18, 0
    %p81 = por %p79, %p80
    %p82 = scmp.ne.s32.totalorder %s70, %s71
    %p83 = scmp.eq.s32.totalorder %s19, 1
    %p84 = por %p82, %p83
    %p86 = scmp.ne.s32.totalorder %s71, %s85
    %p87 = scmp.eq.s32.totalorder %s19, 0
    %p88 = por %p86, %p87
    %s90 = sadd.s32 %s89, 1
    %p93 = scmp.eq.s32.totalorder %s13, 1
    %p94 = scmp.ne.s32.totalorder %s89, %s91
    %p95 = scmp.eq.s32.totalorder %s13, 0
    %p96 = por %p94, %p95
    %p97 = scmp.ne.s32.totalorder %s89, %s91
    %p98 = scmp.eq.s32.totalorder %s18, 1
    %p99 = por %p97, %p98
    %p100 = scmp.ne.s32.totalorder %s91, %s92
    %p101 = scmp.eq.s32.totalorder %s18, 0
    %p102 = por %p100, %p101
    %p103 = scmp.ne.s32.totalorder %s91, %s92
    %p104 = scmp.eq.s32.totalorder %s19, 1
    %p105 = por %p103, %p104
    %p107 = scmp.ne.s32.totalorder %s92, %s106
    %p108 = scmp.eq.s32.totalorder %s19, 0
    %p109 = por %p107, %p108
    %s111 = sadd.s32 %s110, 1
    %p114 = scmp.eq.s32.totalorder %s13, 1
    %p115 = scmp.ne.s32.totalorder %s110, %s112
    %p116 = scmp.eq.s32.totalorder %s13, 0
    %p117 = por %p115, %p116
    %p118 = scmp.ne.s32.totalorder %s110, %s112
    %p119 = scmp.eq.s32.totalorder %s18, 1
    %p120 = por %p118, %p119
    %p121 = scmp.ne.s32.totalorder %s112, %s113
    %p122 = scmp.eq.s32.totalorder %s18, 0
    %p123 = por %p121, %p122
    %p124 = scmp.ne.s32.totalorder %s112, %s113
    %p125 = scmp.eq.s32.totalorder %s19, 1
    %p126 = por %p124, %p125
    %p128 = scmp.ne.s32.totalorder %s113, %s127
    %p129 = scmp.eq.s32.totalorder %s19, 0
    %p130 = por %p128, %p129
    %s132 = sadd.s32 %s131, 1
    %p135 = scmp.eq.s32.totalorder %s13, 1
    %p136 = scmp.ne.s32.totalorder %s131, %s133
    %p137 = scmp.eq.s32.totalorder %s13, 0
    %p138 = por %p136, %p137
    %p139 = scmp.ne.s32.totalorder %s131, %s133
    %p140 = scmp.eq.s32.totalorder %s18, 1
    %p141 = por %p139, %p140
    %p142 = scmp.ne.s32.totalorder %s133, %s134
    %p143 = scmp.eq.s32.totalorder %s18, 0
    %p144 = por %p142, %p143
    %p145 = scmp.ne.s32.totalorder %s133, %s134
    %p146 = scmp.eq.s32.totalorder %s19, 1
    %p147 = por %p145, %p146
    %p149 = scmp.ne.s32.totalorder %s134, %s148
    %p150 = scmp.eq.s32.totalorder %s19, 0
    %p151 = por %p149, %p150
    %s153 = sadd.s32 %s152, 1
    %p156 = scmp.eq.s32.totalorder %s13, 1
    %p157 = scmp.ne.s32.totalorder %s152, %s154
    %p158 = scmp.eq.s32.totalorder %s13, 0
    %p159 = por %p157, %p158
    %p160 = scmp.ne.s32.totalorder %s152, %s154
    %p161 = scmp.eq.s32.totalorder %s18, 1
    %p162 = por %p160, %p161
    %p163 = scmp.ne.s32.totalorder %s154, %s155
    %p164 = scmp.eq.s32.totalorder %s18, 0
    %p165 = por %p163, %p164
    %p166 = scmp.ne.s32.totalorder %s154, %s155
    %p167 = scmp.eq.s32.totalorder %s19, 1
    %p168 = por %p166, %p167
    %p170 = scmp.ne.s32.totalorder %s155, %s169
    %p171 = scmp.eq.s32.totalorder %s19, 0
    %p172 = por %p170, %p171
    %s173 = ssub.s32 %s13, %s20
    %p174 = scmp.eq.s32.totalorder %s173, 0
    %s176 = sadd.s32 %s175, 1
    %s177 = scalar_select %p174, %s175, %s176
    %p180 = pneg %p174
    %p181 = scmp.eq.s32.totalorder %s13, 1
    %p182 = por %p180, %p181
    %p183 = scmp.ne.s32.totalorder %s175, %s178
    %p184 = scmp.eq.s32.totalorder %s13, 0
    %p185 = por %p183, %p184
    %p186 = scmp.ne.s32.totalorder %s175, %s178
    %p187 = scmp.eq.s32.totalorder %s18, 1
    %p188 = por %p186, %p187
    %p189 = scmp.ne.s32.totalorder %s178, %s179
    %p190 = scmp.eq.s32.totalorder %s18, 0
    %p191 = por %p189, %p190
    %p192 = scmp.ne.s32.totalorder %s178, %s179
    %p193 = scmp.eq.s32.totalorder %s19, 1
    %p194 = por %p192, %p193
    %p196 = scmp.ne.s32.totalorder %s179, %s195
    %p197 = scmp.eq.s32.totalorder %s19, 0
    %p198 = por %p196, %p197
    %p199 = scmp.le.s32.totalorder 1, %s13
    %p200 = scmp.lt.s32.totalorder %s13, 3
    %p201 = pnand %p199, %p200
    %p202 = pneg %p201
    // Predicated region
    $region9: #{_lambda_.5} parent=5 // pred_check
      _
    $region10: #{_lambda_.5} parent=5 // pred_check_branch
      %204 = sbr.rel (%p201) target = $region12
    $region11: #{_lambda_.5} parent=5 // pred_region
      %s205 = ssub.s32 %s13, 1
      // Predicated region
      $region13: #{_lambda_.5} parent=11 // pred_check
        %p206 = pneg %p60
      $region14: #{_lambda_.5} parent=11 // pred_check_branch
        %208 = sbr.rel (%p206) target = $region16
      $region15: #{_lambda_.5} parent=11 // pred_region
        _
      $region16: #{_lambda_.5} parent=11 // pred_fallthru
        _
      // Predicated region
      $region17: #{_lambda_.5} parent=11 // pred_check
        %p209 = pneg %p81
      $region18: #{_lambda_.5} parent=11 // pred_check_branch
        %211 = sbr.rel (%p209) target = $region20
      $region19: #{_lambda_.5} parent=11 // pred_region
        _
      $region20: #{_lambda_.5} parent=11 // pred_fallthru
        _
      // Predicated region
      $region21: #{_lambda_.5} parent=11 // pred_check
        %p212 = pneg %p102
      $region22: #{_lambda_.5} parent=11 // pred_check_branch
        %214 = sbr.rel (%p212) target = $region24
      $region23: #{_lambda_.5} parent=11 // pred_region
        _
      $region24: #{_lambda_.5} parent=11 // pred_fallthru
        _
      // Predicated region
      $region25: #{_lambda_.5} parent=11 // pred_check
        %p215 = pneg %p123
      $region26: #{_lambda_.5} parent=11 // pred_check_branch
        %217 = sbr.rel (%p215) target = $region28
      $region27: #{_lambda_.5} parent=11 // pred_region
        _
      $region28: #{_lambda_.5} parent=11 // pred_fallthru
        _
      // Predicated region
      $region29: #{_lambda_.5} parent=11 // pred_check
        %p218 = pneg %p144
      $region30: #{_lambda_.5} parent=11 // pred_check_branch
        %220 = sbr.rel (%p218) target = $region32
      $region31: #{_lambda_.5} parent=11 // pred_region
        _
      $region32: #{_lambda_.5} parent=11 // pred_fallthru
        _
      // Predicated region
      $region33: #{_lambda_.5} parent=11 // pred_check
        %p221 = pneg %p165
      $region34: #{_lambda_.5} parent=11 // pred_check_branch
        %223 = sbr.rel (%p221) target = $region36
      $region35: #{_lambda_.5} parent=11 // pred_region
        _
      $region36: #{_lambda_.5} parent=11 // pred_fallthru
        _
    $region12: #{_lambda_.5} parent=5 // pred_fallthru
      _
    %p224 = scmp.lt.s32.totalorder %s13, 2
    // Predicated region
    $region37: #{_lambda_.5} parent=5 // pred_check
      %p225 = pneg %p224
    $region38: #{_lambda_.5} parent=5 // pred_check_branch
      %227 = sbr.rel (%p225) target = $region40
    $region39: #{_lambda_.5} parent=5 // pred_region
      // Predicated region
      $region41: #{_lambda_.5} parent=39 // pred_check
        %p228 = pneg %p33
      $region42: #{_lambda_.5} parent=39 // pred_check_branch
        %230 = sbr.rel (%p228) target = $region44
      $region43: #{_lambda_.5} parent=39 // pred_region
        %p231 = scmp.lt.s32.totalorder %s13, 1
        %s232 = scalar_select %p231, %s13, 1
        %s233 = smul.addr %s232, 8
        %s234 = scalar_lea.vmem %s0, %s233
      $region44: #{_lambda_.5} parent=39 // pred_fallthru
        _
    $region40: #{_lambda_.5} parent=5 // pred_fallthru
      _
    %p235 = scmp.le.s32.totalorder 1, %s13
    %p236 = scmp.lt.s32.totalorder %s13, 3
    %p237 = pnand %p235, %p236
    %p238 = pneg %p237
    // Predicated region
    $region45: #{_lambda_.5} parent=5 // pred_check
      _
    $region46: #{_lambda_.5} parent=5 // pred_check_branch
      %240 = sbr.rel (%p237) target = $region48
    $region47: #{_lambda_.5} parent=5 // pred_region
      %s241 = ssub.s32 %s13, 1
      %p242 = scmp.lt.s32.totalorder %s18, 1
      %s243 = scalar_select %p242, %s18, 1
      %s244 = smul.addr %s243, 8
      %s245 = scalar_lea.vmem %s0, %s244
      %p246 = pneg %p39
      %p247 = pneg %p36
      %p248 = pneg %p60
      %p249 = pneg %p57
      %p250 = pneg %p81
      %p251 = pneg %p78
      %p252 = pneg %p102
      %p253 = pneg %p99
      %p254 = pneg %p123
      %p255 = pneg %p120
      %p256 = pneg %p144
      %p257 = pneg %p141
      %p258 = pneg %p165
      %p259 = pneg %p162
      %p260 = pneg %p191
      %p261 = pneg %p188
      %p262 = scmp.lt.s32.totalorder %s18, 1
      %s263 = scalar_select %p262, %s18, 1
      %s264 = smul.addr %s263, 8
      %s265 = scalar_lea.vmem %s7, %s264
      %p266 = scmp.lt.s32.totalorder %s18, 1
      %s267 = scalar_select %p266, %s18, 1
      %s268 = smul.addr %s267, 8
      %s269 = scalar_lea.vmem %s0, %s268
      %p270 = scmp.lt.s32.totalorder %s18, 1
      %s271 = scalar_select %p270, %s18, 1
      %s272 = smul.addr %s271, 8
      %s273 = scalar_lea.vmem %s7, %s272
      %v275 = vld [vmem:[%s269] sm:$0xff]
      %v276 = vpack.c.bf16 %v275, %v275
      %v277 = vld [vmem:[%s1] sm:$0xf]
      %v278 = vld [vmem:[%s1 + $0x4] sm:$0xf]
      %v279 = vld [vmem:[%s1 + $0x8] sm:$0xf]
      %v280 = vld [vmem:[%s1 + $0xc] sm:$0xf]
      %v281 = vld [vmem:[%s2] sm:$0x1]
      %v283 = vperm.slane %v281, 0
      %v289 = vunpack.c.l.b16 %v277
      %v290 = vunpack.c.l.b16 %v278
      %v291 = vunpack.c.l.b16 %v279
      %v292 = vunpack.c.l.b16 %v280
      %v293 = vpack.c.b16 %v290, %v289
      %v294 = vpack.c.b16 %v292, %v291
      %vm297 = vcmask 261120
      %v299 = vsel %vm297, %v276, 0
      %301 = vmatpush.bf16.msra.mxu0 0
      %302 = vmatpush.bf16.msra.mxu0 0
      %303 = vmatpush.bf16.msra.mxu0 0
      %304 = vmatpush.bf16.msra.mxu0 0
      %305 = vmatpush.bf16.msra.mxu0 0
      %306 = vmatpush.bf16.msra.mxu0 0
      %307 = vmatpush.bf16.msra.mxu0 %v294
      %308 = vmatpush.bf16.msra.mxu0 %v293
      %309 = vmatmul.bf16.gmra.mxu0 %v299
      %v310 = vpop.f32.mrf.mxu0
      %v311 = vadd.f32 %v283, %v310
      %v312 = vpop.f32.mrf.mxu0
      %313 = vdwg.mxu0
      %v314 = vmax.f32 %v311, 0.0
      %v315 = vpack.c.bf16 %v314, %v314
      %v316 = vld [vmem:[%s3] sm:$0xf]
      %v317 = vld [vmem:[%s3 + $0x4] sm:$0xf]
      %v318 = vld [vmem:[%s3 + $0x8] sm:$0xf]
      %v319 = vld [vmem:[%s3 + $0xc] sm:$0xf]
      %v320 = vld [vmem:[%s3 + $0x10] sm:$0xf]
      %v321 = vld [vmem:[%s3 + $0x14] sm:$0xf]
      %v322 = vld [vmem:[%s3 + $0x18] sm:$0xf]
      %v323 = vld [vmem:[%s3 + $0x1c] sm:$0xf]
      %v324 = vld [vmem:[%s4] sm:$0x1]
      %v326 = vperm.slane %v324, 0
      %v336 = vunpack.c.l.b16 %v316
      %v337 = vunpack.c.l.b16 %v317
      %v338 = vunpack.c.l.b16 %v318
      %v339 = vunpack.c.l.b16 %v319
      %v340 = vunpack.c.l.b16 %v320
      %v341 = vunpack.c.l.b16 %v321
      %v342 = vunpack.c.l.b16 %v322
      %v343 = vunpack.c.l.b16 %v323
      %v344 = vpack.c.b16 %v337, %v336
      %v345 = vpack.c.b16 %v339, %v338
      %v346 = vpack.c.b16 %v341, %v340
      %v347 = vpack.c.b16 %v343, %v342
      %vm352 = vcmask 523264
      %v354 = vsel %vm352, %v315, 0
      %356 = vmatpush.bf16.msra.mxu0 0
      %357 = vmatpush.bf16.msra.mxu0 0
      %358 = vmatpush.bf16.msra.mxu0 0
      %359 = vmatpush.bf16.msra.mxu0 0
      %360 = vmatpush.bf16.msra.mxu0 %v347
      %361 = vmatpush.bf16.msra.mxu0 %v346
      %362 = vmatpush.bf16.msra.mxu0 %v345
      %363 = vmatpush.bf16.msra.mxu0 %v344
      %364 = vmatmul.bf16.gmra.mxu0 %v354
      %v365 = vpop.f32.mrf.mxu0
      %v366 = vadd.f32 %v326, %v365
      %v367 = vpop.f32.mrf.mxu0
      %368 = vdwg.mxu0
      %v369 = vadd.f32 %v366, %v275
      %v370 = vsel %vm297, %v369, 0.0
      %371 = vadd.xlane.f32.xlu0 %v370
      %v372 = vpop.xlane.xlu0 %371
      %v373 = vrcp.pop 32.0
      %v374 = vmul.f32 32.0, %v373
      %v375 = vsub.f32 1.0, %v374
      %v376 = vmul.f32 %v373, %v375
      %v377 = vadd.f32 %v373, %v376
      %vm378 = vweird.f32 %v373
      %v379 = vsel %vm378, %v373, %v377
      %v380 = vmul.f32 %v372, %v379
      %v381 = vsub.f32 %v369, %v380
      %v382 = vmul.f32 %v381, %v381
      %v383 = vsel %vm297, %v382, 0.0
      %384 = vadd.xlane.f32.xlu0 %v383
      %v385 = vpop.xlane.xlu0 %384
      %v386 = vmul.f32 %v385, %v379
      %v387 = vadd.f32 %v386, 1e-05
      %v388 = vrsqrt.pop %v387
      %v389 = vmul.f32 %v388, %v387
      %v390 = vmul.f32 %v389, %v388
      %v391 = vmul.f32 0.5, %v390
      %v392 = vsub.f32 1.5, %v391
      %v393 = vmul.f32 %v388, %v392
      %vm394 = vweird.f32 %v387
      %vm395 = vweird.f32 %v388
      %vm396 = vmor %vm394, %vm395
      %v397 = vsel %vm396, %v388, %v393
      %v398 = vmul.f32 %v381, %v397
      %v399 = vld [vmem:[%s5] sm:$0x1]
      %v401 = vperm.slane %v399, 0
      %v403 = vmul.f32 %v398, %v401
      %v404 = vld [vmem:[%s6] sm:$0x1]
      %v406 = vperm.slane %v404, 0
      %v408 = vadd.f32 %v403, %v406
      %409 = vst.msk [vmem:[%s273] sm:$0xff] %vm297, %v408
      %p410 = scmp.lt.s32.totalorder %s18, 1
      %s411 = scalar_select %p410, %s18, 1
      %s412 = smul.addr %s411, 8
      %s413 = scalar_lea.vmem %s7, %s412
      // Predicated region
      $region49: #{_lambda_.5} parent=47 // pred_check
        %p414 = pneg %p188
      $region50: #{_lambda_.5} parent=47 // pred_check_branch
        %416 = sbr.rel (%p414) target = $region52
      $region51: #{_lambda_.5} parent=47 // pred_region
        _
      $region52: #{_lambda_.5} parent=47 // pred_fallthru
        _
    $region48: #{_lambda_.5} parent=5 // pred_fallthru
      _
    %p417 = scmp.le.s32.totalorder 2, %s13
    // Predicated region
    $region53: #{_lambda_.5} parent=5 // pred_check
      %p418 = pneg %p417
    $region54: #{_lambda_.5} parent=5 // pred_check_branch
      %420 = sbr.rel (%p418) target = $region56
    $region55: #{_lambda_.5} parent=5 // pred_region
      %s421 = ssub.s32 %s13, 2
      // Predicated region
      $region57: #{_lambda_.5} parent=55 // pred_check
        %p422 = pneg %p194
      $region58: #{_lambda_.5} parent=55 // pred_check_branch
        %424 = sbr.rel (%p422) target = $region60
      $region59: #{_lambda_.5} parent=55 // pred_region
        %p425 = scmp.lt.s32.totalorder %s19, 1
        %s426 = scalar_select %p425, %s19, 1
        %s427 = smul.addr %s426, 8
        %s428 = scalar_lea.vmem %s7, %s427
      $region60: #{_lambda_.5} parent=55 // pred_fallthru
        _
    $region56: #{_lambda_.5} parent=5 // pred_fallthru
      _
  $region6: #{_lambda_.5} parent=0 // loop_footer
    %s17 = sadd.s32 1, %s13
  $region7: #{_lambda_.5} parent=0 // loop_footer_branch
    %12 = sbr.rel target = $region3
  $region8: #{_lambda_.5} parent=0 // loop_exit
    _

// kernel: _lambda_.7
$region0: #{_lambda_.7}
  #allocation0 [shape = 'u32[]', space=smem, size = 0x4, offset = 0x4, fixed_abs, tag = 'smem constant byte address 0x4 - core index']
  #allocation1 [shape = 'u32[72,128]{1,0:T(1,128)}', space=vmem, size = 0x9000, scoped, tag = 'internal scratch']
  %s0 = inlined_call_operand.vmem [shape: f32[16,32], index: 0, kind: input, shape index: {}]
  %s1 = inlined_call_operand.vmem [shape: bf16[32,64], index: 1, kind: input, shape index: {}]
  %s2 = inlined_call_operand.vmem [shape: f32[1,64], index: 2, kind: input, shape index: {}]
  %s3 = inlined_call_operand.vmem [shape: bf16[64,32], index: 3, kind: input, shape index: {}]
  %s4 = inlined_call_operand.vmem [shape: f32[1,32], index: 4, kind: input, shape index: {}]
  %s5 = inlined_call_operand.vmem [shape: f32[1,32], index: 5, kind: input, shape index: {}]
  %s6 = inlined_call_operand.vmem [shape: f32[1,32], index: 6, kind: input, shape index: {}]
  %s7 = inlined_call_operand.hbm [shape: f32[16,32], index: 7, kind: output, shape index: {}]
  %s8 = sld [smem:[#allocation0]]
  $region61: #{_lambda_.7} parent=0
    _
  %s10 = ssub.s32 1, %s8
  %s11 = scalar_select 0, %s10, %s8
  $region1: #{_lambda_.7} parent=0
    #allocation2 [shape = 'u8[8192]{0}', space=vmem, size = 0x2000, scoped, tag = 'output window, operand 0']
    #allocation3 [shape = 's32[2]{0}', space=sflag, size = 0x8, scoped, tag = 'scoped memory for _lambda_.7']
    %12 = vsyncpa [#allocation3], 0
    %s13 = scalar_lea.sflag [#allocation3], 1
    %14 = vsyncpa %s13, 0
    loop: start=0, step=1, limit=4
    $region2: #{_lambda_.7} parent=1 // loop_pre_header
      _
    $region3: #{_lambda_.7} parent=1 // loop_header
      %s16 = sphi 0, %s20
      %p17 = scmp.ge.s32.totalorder %s16, 4
      %s26 = sphi 0, %s28
      %s29 = sphi 0, %s26
      %s30 = sphi 0, %s29
      %s46 = sphi 0, %s30
      %s50 = sphi 0, %s50
      %s52 = sphi 0, %s50
      %s53 = sphi 0, %s52
      %s67 = sphi 0, %s53
      %s71 = sphi 0, %s71
      %s73 = sphi 0, %s71
      %s74 = sphi 0, %s73
      %s88 = sphi 0, %s74
      %s92 = sphi 0, %s92
      %s94 = sphi 0, %s92
      %s95 = sphi 0, %s94
      %s109 = sphi 0, %s95
      %s113 = sphi 0, %s113
      %s115 = sphi 0, %s113
      %s116 = sphi 0, %s115
      %s130 = sphi 0, %s116
      %s134 = sphi 0, %s134
      %s136 = sphi 0, %s134
      %s137 = sphi 0, %s136
      %s151 = sphi 0, %s137
      %s155 = sphi 0, %s155
      %s157 = sphi 0, %s155
      %s158 = sphi 0, %s157
      %s172 = sphi 0, %s158
      %s178 = sphi 0, %s180
      %s181 = sphi 0, %s178
      %s182 = sphi 0, %s181
      %s198 = sphi 0, %s182
    $region4: #{_lambda_.7} parent=1 // loop_header_branch
      %19 = sbr.rel (%p17) target = $region8
    $region5: #{_lambda_.7} parent=1 // loop_body
      %s21 = ssub.s32 %s16, 1
      %s22 = ssub.s32 %s16, 2
      %s23 = sadd.s32 %s16, 1
      %s24 = ssub.s32 %s16, %s23
      %p25 = scmp.eq.s32.totalorder %s24, 0
      %s27 = sadd.s32 %s26, 1
      %s28 = scalar_select %p25, %s26, %s27
      %p31 = pneg %p25
      %p32 = scmp.eq.s32.totalorder %s16, 1
      %p33 = por %p31, %p32
      %p34 = scmp.ne.s32.totalorder %s26, %s29
      %p35 = scmp.eq.s32.totalorder %s16, 0
      %p36 = por %p34, %p35
      %p37 = scmp.ne.s32.totalorder %s26, %s29
      %p38 = scmp.eq.s32.totalorder %s21, 1
      %p39 = por %p37, %p38
      %p40 = scmp.ne.s32.totalorder %s29, %s30
      %p41 = scmp.eq.s32.totalorder %s21, 0
      %p42 = por %p40, %p41
      %p43 = scmp.ne.s32.totalorder %s29, %s30
      %p44 = scmp.eq.s32.totalorder %s22, 1
      %p45 = por %p43, %p44
      %p47 = scmp.ne.s32.totalorder %s30, %s46
      %p48 = scmp.eq.s32.totalorder %s22, 0
      %p49 = por %p47, %p48
      %s51 = sadd.s32 %s50, 1
      %p54 = scmp.eq.s32.totalorder %s16, 1
      %p55 = scmp.ne.s32.totalorder %s50, %s52
      %p56 = scmp.eq.s32.totalorder %s16, 0
      %p57 = por %p55, %p56
      %p58 = scmp.ne.s32.totalorder %s50, %s52
      %p59 = scmp.eq.s32.totalorder %s21, 1
      %p60 = por %p58, %p59
      %p61 = scmp.ne.s32.totalorder %s52, %s53
      %p62 = scmp.eq.s32.totalorder %s21, 0
      %p63 = por %p61, %p62
      %p64 = scmp.ne.s32.totalorder %s52, %s53
      %p65 = scmp.eq.s32.totalorder %s22, 1
      %p66 = por %p64, %p65
      %p68 = scmp.ne.s32.totalorder %s53, %s67
      %p69 = scmp.eq.s32.totalorder %s22, 0
      %p70 = por %p68, %p69
      %s72 = sadd.s32 %s71, 1
      %p75 = scmp.eq.s32.totalorder %s16, 1
      %p76 = scmp.ne.s32.totalorder %s71, %s73
      %p77 = scmp.eq.s32.totalorder %s16, 0
      %p78 = por %p76, %p77
      %p79 = scmp.ne.s32.totalorder %s71, %s73
      %p80 = scmp.eq.s32.totalorder %s21, 1
      %p81 = por %p79, %p80
      %p82 = scmp.ne.s32.totalorder %s73, %s74
      %p83 = scmp.eq.s32.totalorder %s21, 0
      %p84 = por %p82, %p83
      %p85 = scmp.ne.s32.totalorder %s73, %s74
      %p86 = scmp.eq.s32.totalorder %s22, 1
      %p87 = por %p85, %p86
      %p89 = scmp.ne.s32.totalorder %s74, %s88
      %p90 = scmp.eq.s32.totalorder %s22, 0
      %p91 = por %p89, %p90
      %s93 = sadd.s32 %s92, 1
      %p96 = scmp.eq.s32.totalorder %s16, 1
      %p97 = scmp.ne.s32.totalorder %s92, %s94
      %p98 = scmp.eq.s32.totalorder %s16, 0
      %p99 = por %p97, %p98
      %p100 = scmp.ne.s32.totalorder %s92, %s94
      %p101 = scmp.eq.s32.totalorder %s21, 1
      %p102 = por %p100, %p101
      %p103 = scmp.ne.s32.totalorder %s94, %s95
      %p104 = scmp.eq.s32.totalorder %s21, 0
      %p105 = por %p103, %p104
      %p106 = scmp.ne.s32.totalorder %s94, %s95
      %p107 = scmp.eq.s32.totalorder %s22, 1
      %p108 = por %p106, %p107
      %p110 = scmp.ne.s32.totalorder %s95, %s109
      %p111 = scmp.eq.s32.totalorder %s22, 0
      %p112 = por %p110, %p111
      %s114 = sadd.s32 %s113, 1
      %p117 = scmp.eq.s32.totalorder %s16, 1
      %p118 = scmp.ne.s32.totalorder %s113, %s115
      %p119 = scmp.eq.s32.totalorder %s16, 0
      %p120 = por %p118, %p119
      %p121 = scmp.ne.s32.totalorder %s113, %s115
      %p122 = scmp.eq.s32.totalorder %s21, 1
      %p123 = por %p121, %p122
      %p124 = scmp.ne.s32.totalorder %s115, %s116
      %p125 = scmp.eq.s32.totalorder %s21, 0
      %p126 = por %p124, %p125
      %p127 = scmp.ne.s32.totalorder %s115, %s116
      %p128 = scmp.eq.s32.totalorder %s22, 1
      %p129 = por %p127, %p128
      %p131 = scmp.ne.s32.totalorder %s116, %s130
      %p132 = scmp.eq.s32.totalorder %s22, 0
      %p133 = por %p131, %p132
      %s135 = sadd.s32 %s134, 1
      %p138 = scmp.eq.s32.totalorder %s16, 1
      %p139 = scmp.ne.s32.totalorder %s134, %s136
      %p140 = scmp.eq.s32.totalorder %s16, 0
      %p141 = por %p139, %p140
      %p142 = scmp.ne.s32.totalorder %s134, %s136
      %p143 = scmp.eq.s32.totalorder %s21, 1
      %p144 = por %p142, %p143
      %p145 = scmp.ne.s32.totalorder %s136, %s137
      %p146 = scmp.eq.s32.totalorder %s21, 0
      %p147 = por %p145, %p146
      %p148 = scmp.ne.s32.totalorder %s136, %s137
      %p149 = scmp.eq.s32.totalorder %s22, 1
      %p150 = por %p148, %p149
      %p152 = scmp.ne.s32.totalorder %s137, %s151
      %p153 = scmp.eq.s32.totalorder %s22, 0
      %p154 = por %p152, %p153
      %s156 = sadd.s32 %s155, 1
      %p159 = scmp.eq.s32.totalorder %s16, 1
      %p160 = scmp.ne.s32.totalorder %s155, %s157
      %p161 = scmp.eq.s32.totalorder %s16, 0
      %p162 = por %p160, %p161
      %p163 = scmp.ne.s32.totalorder %s155, %s157
      %p164 = scmp.eq.s32.totalorder %s21, 1
      %p165 = por %p163, %p164
      %p166 = scmp.ne.s32.totalorder %s157, %s158
      %p167 = scmp.eq.s32.totalorder %s21, 0
      %p168 = por %p166, %p167
      %p169 = scmp.ne.s32.totalorder %s157, %s158
      %p170 = scmp.eq.s32.totalorder %s22, 1
      %p171 = por %p169, %p170
      %p173 = scmp.ne.s32.totalorder %s158, %s172
      %p174 = scmp.eq.s32.totalorder %s22, 0
      %p175 = por %p173, %p174
      %s176 = ssub.s32 %s16, %s23
      %p177 = scmp.eq.s32.totalorder %s176, 0
      %s179 = sadd.s32 %s178, 1
      %s180 = scalar_select %p177, %s178, %s179
      %p183 = pneg %p177
      %p184 = scmp.eq.s32.totalorder %s16, 1
      %p185 = por %p183, %p184
      %p186 = scmp.ne.s32.totalorder %s178, %s181
      %p187 = scmp.eq.s32.totalorder %s16, 0
      %p188 = por %p186, %p187
      %p189 = scmp.ne.s32.totalorder %s178, %s181
      %p190 = scmp.eq.s32.totalorder %s21, 1
      %p191 = por %p189, %p190
      %p192 = scmp.ne.s32.totalorder %s181, %s182
      %p193 = scmp.eq.s32.totalorder %s21, 0
      %p194 = por %p192, %p193
      %p195 = scmp.ne.s32.totalorder %s181, %s182
      %p196 = scmp.eq.s32.totalorder %s22, 1
      %p197 = por %p195, %p196
      %p199 = scmp.ne.s32.totalorder %s182, %s198
      %p200 = scmp.eq.s32.totalorder %s22, 0
      %p201 = por %p199, %p200
      %p202 = scmp.le.s32.totalorder 1, %s16
      %p203 = scmp.lt.s32.totalorder %s16, 3
      %p204 = pnand %p202, %p203
      %p205 = pneg %p204
      // Predicated region
      $region9: #{_lambda_.7} parent=5 // pred_check
        _
      $region10: #{_lambda_.7} parent=5 // pred_check_branch
        %207 = sbr.rel (%p204) target = $region12
      $region11: #{_lambda_.7} parent=5 // pred_region
        %s208 = ssub.s32 %s16, 1
        // Predicated region
        $region13: #{_lambda_.7} parent=11 // pred_check
          %p209 = pneg %p63
        $region14: #{_lambda_.7} parent=11 // pred_check_branch
          %211 = sbr.rel (%p209) target = $region16
        $region15: #{_lambda_.7} parent=11 // pred_region
          _
        $region16: #{_lambda_.7} parent=11 // pred_fallthru
          _
        // Predicated region
        $region17: #{_lambda_.7} parent=11 // pred_check
          %p212 = pneg %p84
        $region18: #{_lambda_.7} parent=11 // pred_check_branch
          %214 = sbr.rel (%p212) target = $region20
        $region19: #{_lambda_.7} parent=11 // pred_region
          _
        $region20: #{_lambda_.7} parent=11 // pred_fallthru
          _
        // Predicated region
        $region21: #{_lambda_.7} parent=11 // pred_check
          %p215 = pneg %p105
        $region22: #{_lambda_.7} parent=11 // pred_check_branch
          %217 = sbr.rel (%p215) target = $region24
        $region23: #{_lambda_.7} parent=11 // pred_region
          _
        $region24: #{_lambda_.7} parent=11 // pred_fallthru
          _
        // Predicated region
        $region25: #{_lambda_.7} parent=11 // pred_check
          %p218 = pneg %p126
        $region26: #{_lambda_.7} parent=11 // pred_check_branch
          %220 = sbr.rel (%p218) target = $region28
        $region27: #{_lambda_.7} parent=11 // pred_region
          _
        $region28: #{_lambda_.7} parent=11 // pred_fallthru
          _
        // Predicated region
        $region29: #{_lambda_.7} parent=11 // pred_check
          %p221 = pneg %p147
        $region30: #{_lambda_.7} parent=11 // pred_check_branch
          %223 = sbr.rel (%p221) target = $region32
        $region31: #{_lambda_.7} parent=11 // pred_region
          _
        $region32: #{_lambda_.7} parent=11 // pred_fallthru
          _
        // Predicated region
        $region33: #{_lambda_.7} parent=11 // pred_check
          %p224 = pneg %p168
        $region34: #{_lambda_.7} parent=11 // pred_check_branch
          %226 = sbr.rel (%p224) target = $region36
        $region35: #{_lambda_.7} parent=11 // pred_region
          _
        $region36: #{_lambda_.7} parent=11 // pred_fallthru
          _
      $region12: #{_lambda_.7} parent=5 // pred_fallthru
        _
      %p227 = scmp.lt.s32.totalorder %s16, 2
      // Predicated region
      $region37: #{_lambda_.7} parent=5 // pred_check
        %p228 = pneg %p227
      $region38: #{_lambda_.7} parent=5 // pred_check_branch
        %230 = sbr.rel (%p228) target = $region40
      $region39: #{_lambda_.7} parent=5 // pred_region
        // Predicated region
        $region41: #{_lambda_.7} parent=39 // pred_check
          %p231 = pneg %p36
        $region42: #{_lambda_.7} parent=39 // pred_check_branch
          %233 = sbr.rel (%p231) target = $region44
        $region43: #{_lambda_.7} parent=39 // pred_region
          %p234 = scmp.lt.s32.totalorder %s16, 1
          %s235 = scalar_select %p234, %s16, 1
          %s236 = smul.addr %s235, 8
          %s237 = scalar_lea.vmem %s0, %s236
        $region44: #{_lambda_.7} parent=39 // pred_fallthru
          _
      $region40: #{_lambda_.7} parent=5 // pred_fallthru
        _
      %p238 = scmp.le.s32.totalorder 1, %s16
      %p239 = scmp.lt.s32.totalorder %s16, 3
      %p240 = pnand %p238, %p239
      %p241 = pneg %p240
      // Predicated region
      $region45: #{_lambda_.7} parent=5 // pred_check
        _
      $region46: #{_lambda_.7} parent=5 // pred_check_branch
        %243 = sbr.rel (%p240) target = $region48
      $region47: #{_lambda_.7} parent=5 // pred_region
        %s244 = ssub.s32 %s16, 1
        %p245 = scmp.lt.s32.totalorder %s21, 1
        %s246 = scalar_select %p245, %s21, 1
        %s247 = smul.addr %s246, 8
        %s248 = scalar_lea.vmem %s0, %s247
        %p249 = pneg %p42
        %p250 = pneg %p39
        %p251 = pneg %p63
        %p252 = pneg %p60
        %p253 = pneg %p84
        %p254 = pneg %p81
        %p255 = pneg %p105
        %p256 = pneg %p102
        %p257 = pneg %p126
        %p258 = pneg %p123
        %p259 = pneg %p147
        %p260 = pneg %p144
        %p261 = pneg %p168
        %p262 = pneg %p165
        %p263 = pneg %p194
        %p264 = pneg %p191
        %s265 = sand.u32 %s181, 1
        %s266 = scalar_lea.sflag [#allocation3], %s265
        %s267 = sand.u32 %s181, 1
        %s268 = smul.addr %s267, 8
        %s269 = scalar_lea.vmem [#allocation2], %s268
        %p270 = scmp.lt.s32.totalorder %s21, 1
        %s271 = scalar_select %p270, %s21, 1
        %s272 = smul.addr %s271, 8
        %s273 = scalar_lea.vmem %s0, %s272
        %v275 = vld [vmem:[%s273] sm:$0xff]
        %v276 = vpack.c.bf16 %v275, %v275
        %v277 = vld [vmem:[%s1] sm:$0xf]
        %v278 = vld [vmem:[%s1 + $0x4] sm:$0xf]
        %v279 = vld [vmem:[%s1 + $0x8] sm:$0xf]
        %v280 = vld [vmem:[%s1 + $0xc] sm:$0xf]
        %v281 = vld [vmem:[%s2] sm:$0x1]
        %v283 = vperm.slane %v281, 0
        %v289 = vunpack.c.l.b16 %v277
        %v290 = vunpack.c.l.b16 %v278
        %v291 = vunpack.c.l.b16 %v279
        %v292 = vunpack.c.l.b16 %v280
        %v293 = vpack.c.b16 %v290, %v289
        %v294 = vpack.c.b16 %v292, %v291
        %vm297 = vcmask 261120
        %v299 = vsel %vm297, %v276, 0
        %301 = vmatpush.bf16.msra.mxu0 0
        %302 = vmatpush.bf16.msra.mxu0 0
        %303 = vmatpush.bf16.msra.mxu0 0
        %304 = vmatpush.bf16.msra.mxu0 0
        %305 = vmatpush.bf16.msra.mxu0 0
        %306 = vmatpush.bf16.msra.mxu0 0
        %307 = vmatpush.bf16.msra.mxu0 %v294
        %308 = vmatpush.bf16.msra.mxu0 %v293
        %309 = vmatmul.bf16.gmra.mxu0 %v299
        %v310 = vpop.f32.mrf.mxu0
        %v311 = vadd.f32 %v283, %v310
        %v312 = vpop.f32.mrf.mxu0
        %313 = vdwg.mxu0
        %v314 = vmax.f32 %v311, 0.0
        %v315 = vpack.c.bf16 %v314, %v314
        %v316 = vld [vmem:[%s3] sm:$0xf]
        %v317 = vld [vmem:[%s3 + $0x4] sm:$0xf]
        %v318 = vld [vmem:[%s3 + $0x8] sm:$0xf]
        %v319 = vld [vmem:[%s3 + $0xc] sm:$0xf]
        %v320 = vld [vmem:[%s3 + $0x10] sm:$0xf]
        %v321 = vld [vmem:[%s3 + $0x14] sm:$0xf]
        %v322 = vld [vmem:[%s3 + $0x18] sm:$0xf]
        %v323 = vld [vmem:[%s3 + $0x1c] sm:$0xf]
        %v324 = vld [vmem:[%s4] sm:$0x1]
        %v326 = vperm.slane %v324, 0
        %v336 = vunpack.c.l.b16 %v316
        %v337 = vunpack.c.l.b16 %v317
        %v338 = vunpack.c.l.b16 %v318
        %v339 = vunpack.c.l.b16 %v319
        %v340 = vunpack.c.l.b16 %v320
        %v341 = vunpack.c.l.b16 %v321
        %v342 = vunpack.c.l.b16 %v322
        %v343 = vunpack.c.l.b16 %v323
        %v344 = vpack.c.b16 %v337, %v336
        %v345 = vpack.c.b16 %v339, %v338
        %v346 = vpack.c.b16 %v341, %v340
        %v347 = vpack.c.b16 %v343, %v342
        %vm352 = vcmask 523264
        %v354 = vsel %vm352, %v315, 0
        %356 = vmatpush.bf16.msra.mxu0 0
        %357 = vmatpush.bf16.msra.mxu0 0
        %358 = vmatpush.bf16.msra.mxu0 0
        %359 = vmatpush.bf16.msra.mxu0 0
        %360 = vmatpush.bf16.msra.mxu0 %v347
        %361 = vmatpush.bf16.msra.mxu0 %v346
        %362 = vmatpush.bf16.msra.mxu0 %v345
        %363 = vmatpush.bf16.msra.mxu0 %v344
        %364 = vmatmul.bf16.gmra.mxu0 %v354
        %v365 = vpop.f32.mrf.mxu0
        %v366 = vadd.f32 %v326, %v365
        %v367 = vpop.f32.mrf.mxu0
        %368 = vdwg.mxu0
        %v369 = vadd.f32 %v366, %v275
        %v370 = vsel %vm297, %v369, 0.0
        %371 = vadd.xlane.f32.xlu0 %v370
        %v372 = vpop.xlane.xlu0 %371
        %v373 = vrcp.pop 32.0
        %v374 = vmul.f32 32.0, %v373
        %v375 = vsub.f32 1.0, %v374
        %v376 = vmul.f32 %v373, %v375
        %v377 = vadd.f32 %v373, %v376
        %vm378 = vweird.f32 %v373
        %v379 = vsel %vm378, %v373, %v377
        %v380 = vmul.f32 %v372, %v379
        %v381 = vsub.f32 %v369, %v380
        %v382 = vmul.f32 %v381, %v381
        %v383 = vsel %vm297, %v382, 0.0
        %384 = vadd.xlane.f32.xlu0 %v383
        %v385 = vpop.xlane.xlu0 %384
        %v386 = vmul.f32 %v385, %v379
        %v387 = vadd.f32 %v386, 1e-05
        %v388 = vrsqrt.pop %v387
        %v389 = vmul.f32 %v388, %v387
        %v390 = vmul.f32 %v389, %v388
        %v391 = vmul.f32 0.5, %v390
        %v392 = vsub.f32 1.5, %v391
        %v393 = vmul.f32 %v388, %v392
        %vm394 = vweird.f32 %v387
        %vm395 = vweird.f32 %v388
        %vm396 = vmor %vm394, %vm395
        %v397 = vsel %vm396, %v388, %v393
        %v398 = vmul.f32 %v381, %v397
        %v399 = vld [vmem:[%s5] sm:$0x1]
        %v401 = vperm.slane %v399, 0
        %v403 = vmul.f32 %v398, %v401
        %v404 = vld [vmem:[%s6] sm:$0x1]
        %v406 = vperm.slane %v404, 0
        %v408 = vadd.f32 %v403, %v406
        %409 = vst.msk [vmem:[%s269] sm:$0xff] %vm297, %v408
        %s410 = sand.u32 %s181, 1
        %s411 = scalar_lea.sflag [#allocation3], %s410
        %s412 = sand.u32 %s181, 1
        %s413 = smul.addr %s412, 8
        %s414 = scalar_lea.vmem [#allocation2], %s413
        // Predicated region
        $region49: #{_lambda_.7} parent=47 // pred_check
          %p415 = pneg %p191
        $region50: #{_lambda_.7} parent=47 // pred_check_branch
          %417 = sbr.rel (%p415) target = $region52
        $region51: #{_lambda_.7} parent=47 // pred_region
          %419 = vsyncadd %s411, 0
          %s420 = smul.addr %s21, 8
          %s421 = scalar_lea.hbm %s7, %s420
          %s423 = sshll.u32 %s414, 4
          %s424 = int_to_ptr.vmem [resolvable:$true] %s423
          %s425 = sshll.u32 %s421, 4
          %s426 = int_to_ptr.hbm [resolvable:$true] %s425
          %428 = dma.vmem_to_hbm [thread:$0]  %s424, 128, %s426, %s411
        $region52: #{_lambda_.7} parent=47 // pred_fallthru
          _
      $region48: #{_lambda_.7} parent=5 // pred_fallthru
        _
      %p429 = scmp.le.s32.totalorder 2, %s16
      // Predicated region
      $region53: #{_lambda_.7} parent=5 // pred_check
        %p430 = pneg %p429
      $region54: #{_lambda_.7} parent=5 // pred_check_branch
        %432 = sbr.rel (%p430) target = $region56
      $region55: #{_lambda_.7} parent=5 // pred_region
        %s433 = ssub.s32 %s16, 2
        // Predicated region
        $region57: #{_lambda_.7} parent=55 // pred_check
          %p434 = pneg %p197
        $region58: #{_lambda_.7} parent=55 // pred_check_branch
          %436 = sbr.rel (%p434) target = $region60
        $region59: #{_lambda_.7} parent=55 // pred_region
          %s437 = sand.u32 %s182, 1
          %s438 = scalar_lea.sflag [#allocation3], %s437
          %s439 = sand.u32 %s182, 1
          %s440 = smul.addr %s439, 8
          %s441 = scalar_lea.vmem [#allocation2], %s440
          %443 = dma.done %s438, 128
        $region60: #{_lambda_.7} parent=55 // pred_fallthru
          _
      $region56: #{_lambda_.7} parent=5 // pred_fallthru
        _
    $region6: #{_lambda_.7} parent=1 // loop_footer
      %s20 = sadd.s32 1, %s16
    $region7: #{_lambda_.7} parent=1 // loop_footer_branch
      %15 = sbr.rel target = $region3
    $region8: #{_lambda_.7} parent=1 // loop_exit
      _
    %444 = vsyncpa [#allocation3], 1
    %s445 = scalar_lea.sflag [#allocation3], 1
    %446 = vsyncpa %s445, 1

// kernel: _lambda_.4
$region0: #{_lambda_.4}
  #allocation0 [shape = 'u32[]', space=smem, size = 0x4, offset = 0x4, fixed_abs, tag = 'smem constant byte address 0x4 - core index']
  #allocation1 [shape = 'u32[72,128]{1,0:T(1,128)}', space=vmem, size = 0x9000, scoped, tag = 'internal scratch']
  %s0 = inlined_call_operand.vmem [shape: f32[2,8,32], index: 0, kind: input, shape index: {}]
  %s1 = inlined_call_operand.vmem [shape: f32[2,1,8], index: 1, kind: input, shape index: {}]
  %s2 = inlined_call_operand.vmem [shape: bf16[32,96], index: 2, kind: input, shape index: {}]
  %s3 = inlined_call_operand.vmem [shape: bf16[32,32], index: 3, kind: input, shape index: {}]
  %s4 = inlined_call_operand.vmem [shape: f32[1,32], index: 4, kind: input, shape index: {}]
  %s5 = inlined_call_operand.vmem [shape: f32[1,32], index: 5, kind: input, shape index: {}]
  %s6 = inlined_call_operand.vmem [shape: f32[1,32], index: 6, kind: input, shape index: {}]
  %s7 = inlined_call_operand.vmem [shape: f32[2,8,32], index: 7, kind: output, shape index: {}]
  %s8 = sld [smem:[#allocation0]]
  $region61: #{_lambda_.4} parent=0
    _
  %s10 = ssub.s32 1, %s8
  %s11 = scalar_select 0, %s10, %s8
  loop: start=0, step=1, limit=4
  $region2: #{_lambda_.4} parent=0 // loop_pre_header
    _
  $region3: #{_lambda_.4} parent=0 // loop_header
    %s13 = sphi 0, %s17
    %p14 = scmp.ge.s32.totalorder %s13, 4
    %s23 = sphi 0, %s25
    %s26 = sphi 0, %s23
    %s27 = sphi 0, %s26
    %s43 = sphi 0, %s27
    %s49 = sphi 0, %s51
    %s52 = sphi 0, %s49
    %s53 = sphi 0, %s52
    %s69 = sphi 0, %s53
    %s73 = sphi 0, %s73
    %s75 = sphi 0, %s73
    %s76 = sphi 0, %s75
    %s90 = sphi 0, %s76
    %s94 = sphi 0, %s94
    %s96 = sphi 0, %s94
    %s97 = sphi 0, %s96
    %s111 = sphi 0, %s97
    %s115 = sphi 0, %s115
    %s117 = sphi 0, %s115
    %s118 = sphi 0, %s117
    %s132 = sphi 0, %s118
    %s136 = sphi 0, %s136
    %s138 = sphi 0, %s136
    %s139 = sphi 0, %s138
    %s153 = sphi 0, %s139
    %s157 = sphi 0, %s157
    %s159 = sphi 0, %s157
    %s160 = sphi 0, %s159
    %s174 = sphi 0, %s160
    %s180 = sphi 0, %s182
    %s183 = sphi 0, %s180
    %s184 = sphi 0, %s183
    %s200 = sphi 0, %s184
  $region4: #{_lambda_.4} parent=0 // loop_header_branch
    %16 = sbr.rel (%p14) target = $region8
  $region5: #{_lambda_.4} parent=0 // loop_body
    %s18 = ssub.s32 %s13, 1
    %s19 = ssub.s32 %s13, 2
    %s20 = sadd.s32 %s13, 1
    %s21 = ssub.s32 %s13, %s20
    %p22 = scmp.eq.s32.totalorder %s21, 0
    %s24 = sadd.s32 %s23, 1
    %s25 = scalar_select %p22, %s23, %s24
    %p28 = pneg %p22
    %p29 = scmp.eq.s32.totalorder %s13, 1
    %p30 = por %p28, %p29
    %p31 = scmp.ne.s32.totalorder %s23, %s26
    %p32 = scmp.eq.s32.totalorder %s13, 0
    %p33 = por %p31, %p32
    %p34 = scmp.ne.s32.totalorder %s23, %s26
    %p35 = scmp.eq.s32.totalorder %s18, 1
    %p36 = por %p34, %p35
    %p37 = scmp.ne.s32.totalorder %s26, %s27
    %p38 = scmp.eq.s32.totalorder %s18, 0
    %p39 = por %p37, %p38
    %p40 = scmp.ne.s32.totalorder %s26, %s27
    %p41 = scmp.eq.s32.totalorder %s19, 1
    %p42 = por %p40, %p41
    %p44 = scmp.ne.s32.totalorder %s27, %s43
    %p45 = scmp.eq.s32.totalorder %s19, 0
    %p46 = por %p44, %p45
    %s47 = ssub.s32 %s13, %s20
    %p48 = scmp.eq.s32.totalorder %s47, 0
    %s50 = sadd.s32 %s49, 1
    %s51 = scalar_select %p48, %s49, %s50
    %p54 = pneg %p48
    %p55 = scmp.eq.s32.totalorder %s13, 1
    %p56 = por %p54, %p55
    %p57 = scmp.ne.s32.totalorder %s49, %s52
    %p58 = scmp.eq.s32.totalorder %s13, 0
    %p59 = por %p57, %p58
    %p60 = scmp.ne.s32.totalorder %s49, %s52
    %p61 = scmp.eq.s32.totalorder %s18, 1
    %p62 = por %p60, %p61
    %p63 = scmp.ne.s32.totalorder %s52, %s53
    %p64 = scmp.eq.s32.totalorder %s18, 0
    %p65 = por %p63, %p64
    %p66 = scmp.ne.s32.totalorder %s52, %s53
    %p67 = scmp.eq.s32.totalorder %s19, 1
    %p68 = por %p66, %p67
    %p70 = scmp.ne.s32.totalorder %s53, %s69
    %p71 = scmp.eq.s32.totalorder %s19, 0
    %p72 = por %p70, %p71
    %s74 = sadd.s32 %s73, 1
    %p77 = scmp.eq.s32.totalorder %s13, 1
    %p78 = scmp.ne.s32.totalorder %s73, %s75
    %p79 = scmp.eq.s32.totalorder %s13, 0
    %p80 = por %p78, %p79
    %p81 = scmp.ne.s32.totalorder %s73, %s75
    %p82 = scmp.eq.s32.totalorder %s18, 1
    %p83 = por %p81, %p82
    %p84 = scmp.ne.s32.totalorder %s75, %s76
    %p85 = scmp.eq.s32.totalorder %s18, 0
    %p86 = por %p84, %p85
    %p87 = scmp.ne.s32.totalorder %s75, %s76
    %p88 = scmp.eq.s32.totalorder %s19, 1
    %p89 = por %p87, %p88
    %p91 = scmp.ne.s32.totalorder %s76, %s90
    %p92 = scmp.eq.s32.totalorder %s19, 0
    %p93 = por %p91, %p92
    %s95 = sadd.s32 %s94, 1
    %p98 = scmp.eq.s32.totalorder %s13, 1
    %p99 = scmp.ne.s32.totalorder %s94, %s96
    %p100 = scmp.eq.s32.totalorder %s13, 0
    %p101 = por %p99, %p100
    %p102 = scmp.ne.s32.totalorder %s94, %s96
    %p103 = scmp.eq.s32.totalorder %s18, 1
    %p104 = por %p102, %p103
    %p105 = scmp.ne.s32.totalorder %s96, %s97
    %p106 = scmp.eq.s32.totalorder %s18, 0
    %p107 = por %p105, %p106
    %p108 = scmp.ne.s32.totalorder %s96, %s97
    %p109 = scmp.eq.s32.totalorder %s19, 1
    %p110 = por %p108, %p109
    %p112 = scmp.ne.s32.totalorder %s97, %s111
    %p113 = scmp.eq.s32.totalorder %s19, 0
    %p114 = por %p112, %p113
    %s116 = sadd.s32 %s115, 1
    %p119 = scmp.eq.s32.totalorder %s13, 1
    %p120 = scmp.ne.s32.totalorder %s115, %s117
    %p121 = scmp.eq.s32.totalorder %s13, 0
    %p122 = por %p120, %p121
    %p123 = scmp.ne.s32.totalorder %s115, %s117
    %p124 = scmp.eq.s32.totalorder %s18, 1
    %p125 = por %p123, %p124
    %p126 = scmp.ne.s32.totalorder %s117, %s118
    %p127 = scmp.eq.s32.totalorder %s18, 0
    %p128 = por %p126, %p127
    %p129 = scmp.ne.s32.totalorder %s117, %s118
    %p130 = scmp.eq.s32.totalorder %s19, 1
    %p131 = por %p129, %p130
    %p133 = scmp.ne.s32.totalorder %s118, %s132
    %p134 = scmp.eq.s32.totalorder %s19, 0
    %p135 = por %p133, %p134
    %s137 = sadd.s32 %s136, 1
    %p140 = scmp.eq.s32.totalorder %s13, 1
    %p141 = scmp.ne.s32.totalorder %s136, %s138
    %p142 = scmp.eq.s32.totalorder %s13, 0
    %p143 = por %p141, %p142
    %p144 = scmp.ne.s32.totalorder %s136, %s138
    %p145 = scmp.eq.s32.totalorder %s18, 1
    %p146 = por %p144, %p145
    %p147 = scmp.ne.s32.totalorder %s138, %s139
    %p148 = scmp.eq.s32.totalorder %s18, 0
    %p149 = por %p147, %p148
    %p150 = scmp.ne.s32.totalorder %s138, %s139
    %p151 = scmp.eq.s32.totalorder %s19, 1
    %p152 = por %p150, %p151
    %p154 = scmp.ne.s32.totalorder %s139, %s153
    %p155 = scmp.eq.s32.totalorder %s19, 0
    %p156 = por %p154, %p155
    %s158 = sadd.s32 %s157, 1
    %p161 = scmp.eq.s32.totalorder %s13, 1
    %p162 = scmp.ne.s32.totalorder %s157, %s159
    %p163 = scmp.eq.s32.totalorder %s13, 0
    %p164 = por %p162, %p163
    %p165 = scmp.ne.s32.totalorder %s157, %s159
    %p166 = scmp.eq.s32.totalorder %s18, 1
    %p167 = por %p165, %p166
    %p168 = scmp.ne.s32.totalorder %s159, %s160
    %p169 = scmp.eq.s32.totalorder %s18, 0
    %p170 = por %p168, %p169
    %p171 = scmp.ne.s32.totalorder %s159, %s160
    %p172 = scmp.eq.s32.totalorder %s19, 1
    %p173 = por %p171, %p172
    %p175 = scmp.ne.s32.totalorder %s160, %s174
    %p176 = scmp.eq.s32.totalorder %s19, 0
    %p177 = por %p175, %p176
    %s178 = ssub.s32 %s13, %s20
    %p179 = scmp.eq.s32.totalorder %s178, 0
    %s181 = sadd.s32 %s180, 1
    %s182 = scalar_select %p179, %s180, %s181
    %p185 = pneg %p179
    %p186 = scmp.eq.s32.totalorder %s13, 1
    %p187 = por %p185, %p186
    %p188 = scmp.ne.s32.totalorder %s180, %s183
    %p189 = scmp.eq.s32.totalorder %s13, 0
    %p190 = por %p188, %p189
    %p191 = scmp.ne.s32.totalorder %s180, %s183
    %p192 = scmp.eq.s32.totalorder %s18, 1
    %p193 = por %p191, %p192
    %p194 = scmp.ne.s32.totalorder %s183, %s184
    %p195 = scmp.eq.s32.totalorder %s18, 0
    %p196 = por %p194, %p195
    %p197 = scmp.ne.s32.totalorder %s183, %s184
    %p198 = scmp.eq.s32.totalorder %s19, 1
    %p199 = por %p197, %p198
    %p201 = scmp.ne.s32.totalorder %s184, %s200
    %p202 = scmp.eq.s32.totalorder %s19, 0
    %p203 = por %p201, %p202
    %p204 = scmp.le.s32.totalorder 1, %s13
    %p205 = scmp.lt.s32.totalorder %s13, 3
    %p206 = pnand %p204, %p205
    %p207 = pneg %p206
    // Predicated region
    $region9: #{_lambda_.4} parent=5 // pred_check
      _
    $region10: #{_lambda_.4} parent=5 // pred_check_branch
      %209 = sbr.rel (%p206) target = $region12
    $region11: #{_lambda_.4} parent=5 // pred_region
      %s210 = ssub.s32 %s13, 1
      // Predicated region
      $region13: #{_lambda_.4} parent=11 // pred_check
        %p211 = pneg %p86
      $region14: #{_lambda_.4} parent=11 // pred_check_branch
        %213 = sbr.rel (%p211) target = $region16
      $region15: #{_lambda_.4} parent=11 // pred_region
        _
      $region16: #{_lambda_.4} parent=11 // pred_fallthru
        _
      // Predicated region
      $region17: #{_lambda_.4} parent=11 // pred_check
        %p214 = pneg %p107
      $region18: #{_lambda_.4} parent=11 // pred_check_branch
        %216 = sbr.rel (%p214) target = $region20
      $region19: #{_lambda_.4} parent=11 // pred_region
        _
      $region20: #{_lambda_.4} parent=11 // pred_fallthru
        _
      // Predicated region
      $region21: #{_lambda_.4} parent=11 // pred_check
        %p217 = pneg %p128
      $region22: #{_lambda_.4} parent=11 // pred_check_branch
        %219 = sbr.rel (%p217) target = $region24
      $region23: #{_lambda_.4} parent=11 // pred_region
        _
      $region24: #{_lambda_.4} parent=11 // pred_fallthru
        _
      // Predicated region
      $region25: #{_lambda_.4} parent=11 // pred_check
        %p220 = pneg %p149
      $region26: #{_lambda_.4} parent=11 // pred_check_branch
        %222 = sbr.rel (%p220) target = $region28
      $region27: #{_lambda_.4} parent=11 // pred_region
        _
      $region28: #{_lambda_.4} parent=11 // pred_fallthru
        _
      // Predicated region
      $region29: #{_lambda_.4} parent=11 // pred_check
        %p223 = pneg %p170
      $region30: #{_lambda_.4} parent=11 // pred_check_branch
        %225 = sbr.rel (%p223) target = $region32
      $region31: #{_lambda_.4} parent=11 // pred_region
        _
      $region32: #{_lambda_.4} parent=11 // pred_fallthru
        _
    $region12: #{_lambda_.4} parent=5 // pred_fallthru
      _
    %p226 = scmp.lt.s32.totalorder %s13, 2
    // Predicated region
    $region33: #{_lambda_.4} parent=5 // pred_check
      %p227 = pneg %p226
    $region34: #{_lambda_.4} parent=5 // pred_check_branch
      %229 = sbr.rel (%p227) target = $region36
    $region35: #{_lambda_.4} parent=5 // pred_region
      // Predicated region
      $region37: #{_lambda_.4} parent=35 // pred_check
        %p230 = pneg %p33
      $region38: #{_lambda_.4} parent=35 // pred_check_branch
        %232 = sbr.rel (%p230) target = $region40
      $region39: #{_lambda_.4} parent=35 // pred_region
        %p233 = scmp.lt.s32.totalorder %s13, 1
        %s234 = scalar_select %p233, %s13, 1
        %s235 = smul.addr %s234, 8
        %s236 = scalar_lea.vmem %s0, %s235
      $region40: #{_lambda_.4} parent=35 // pred_fallthru
        _
      // Predicated region
      $region41: #{_lambda_.4} parent=35 // pred_check
        %p237 = pneg %p59
      $region42: #{_lambda_.4} parent=35 // pred_check_branch
        %239 = sbr.rel (%p237) target = $region44
      $region43: #{_lambda_.4} parent=35 // pred_region
        %p240 = scmp.lt.s32.totalorder %s13, 1
        %s241 = scalar_select %p240, %s13, 1
        %s242 = scalar_lea.vmem %s1, %s241
      $region44: #{_lambda_.4} parent=35 // pred_fallthru
        _
    $region36: #{_lambda_.4} parent=5 // pred_fallthru
      _
    %p243 = scmp.le.s32.totalorder 1, %s13
    %p244 = scmp.lt.s32.totalorder %s13, 3
    %p245 = pnand %p243, %p244
    %p246 = pneg %p245
    // Predicated region
    $region45: #{_lambda_.4} parent=5 // pred_check
      _
    $region46: #{_lambda_.4} parent=5 // pred_check_branch
      %248 = sbr.rel (%p245) target = $region48
    $region47: #{_lambda_.4} parent=5 // pred_region
      %s249 = ssub.s32 %s13, 1
      %p250 = scmp.lt.s32.totalorder %s18, 1
      %s251 = scalar_select %p250, %s18, 1
      %s252 = smul.addr %s251, 8
      %s253 = scalar_lea.vmem %s0, %s252
      %p254 = pneg %p39
      %p255 = pneg %p36
      %p256 = scmp.lt.s32.totalorder %s18, 1
      %s257 = scalar_select %p256, %s18, 1
      %s258 = scalar_lea.vmem %s1, %s257
      %p259 = pneg %p65
      %p260 = pneg %p62
      %p261 = pneg %p86
      %p262 = pneg %p83
      %p263 = pneg %p107
      %p264 = pneg %p104
      %p265 = pneg %p128
      %p266 = pneg %p125
      %p267 = pneg %p149
      %p268 = pneg %p146
      %p269 = pneg %p170
      %p270 = pneg %p167
      %p271 = pneg %p196
      %p272 = pneg %p193
      %p273 = scmp.lt.s32.totalorder %s18, 1
      %s274 = scalar_select %p273, %s18, 1
      %s275 = smul.addr %s274, 8
      %s276 = scalar_lea.vmem %s7, %s275
      %p277 = scmp.lt.s32.totalorder %s18, 1
      %s278 = scalar_select %p277, %s18, 1
      %s279 = smul.addr %s278, 8
      %s280 = scalar_lea.vmem %s0, %s279
      %p281 = scmp.lt.s32.totalorder %s18, 1
      %s282 = scalar_select %p281, %s18, 1
      %s283 = scalar_lea.vmem %s1, %s282
      %p284 = scmp.lt.s32.totalorder %s18, 1
      %s285 = scalar_select %p284, %s18, 1
      %s286 = smul.addr %s285, 8
      %s287 = scalar_lea.vmem %s7, %s286
      %v289 = vld [vmem:[%s280] sm:$0xff]
      %v290 = vpack.c.bf16 %v289, %v289
      %v291 = vld [vmem:[%s2] sm:$0xf]
      %v292 = vld [vmem:[%s2 + $0x4] sm:$0xf]
      %v293 = vld [vmem:[%s2 + $0x8] sm:$0xf]
      %v294 = vld [vmem:[%s2 + $0xc] sm:$0xf]
      %v299 = vunpack.c.l.b16 %v291
      %v300 = vunpack.c.l.b16 %v292
      %v301 = vunpack.c.l.b16 %v293
      %v302 = vunpack.c.l.b16 %v294
      %v303 = vpack.c.b16 %v300, %v299
      %v304 = vpack.c.b16 %v302, %v301
      %vm307 = vcmask 261120
      %v309 = vsel %vm307, %v290, 0
      %311 = vmatpush.bf16.msra.mxu0 0
      %312 = vmatpush.bf16.msra.mxu0 0
      %313 = vmatpush.bf16.msra.mxu0 0
      %314 = vmatpush.bf16.msra.mxu0 0
      %315 = vmatpush.bf16.msra.mxu0 0
      %316 = vmatpush.bf16.msra.mxu0 0
      %317 = vmatpush.bf16.msra.mxu0 %v304
      %318 = vmatpush.bf16.msra.mxu0 %v303
      %319 = vmatmul.bf16.gmra.mxu0 %v309
      %v320 = vpop.f32.mrf.mxu0
      %v321 = vadd.f32 0.0, %v320
      %v322 = vpop.f32.mrf.mxu0
      %323 = vdwg.mxu0
      %v324 = vld [vmem:[%s283] sm:$0x1]
      %v325 = vpack.c.bf16 %v321, %v321
      %327 = vrot.lane.b32.xlu0 %v325, 96
      %v328 = vpop.permute.xlu0 %327
      %vm329 = vcmask 64512
      %v331 = vsel %vm329, %v325, 0
      %v334 = vsel %vm329, %v328, 0
      %336 = vmatpush.bf16.xpose.msra.mxu0 0
      %337 = vmatpush.bf16.xpose.msra.mxu0 0
      %338 = vmatpush.bf16.xpose.msra.mxu0 0
      %339 = vmatpush.bf16.xpose.msra.mxu0 0
      %340 = vmatpush.bf16.xpose.msra.mxu0 0
      %341 = vmatpush.bf16.xpose.msra.mxu0 0
      %342 = vmatpush.bf16.xpose.msra.mxu0 0
      %343 = vmatpush.bf16.xpose.msra.mxu0 %v334
      %344 = vmatmul.bf16.gmra.mxu0 %v331
      %v345 = vpop.f32.mrf.mxu0
      %v346 = vadd.f32 0.0, %v345
      %v347 = vpop.f32.mrf.mxu0
      %348 = vdwg.mxu0
      %vm349 = vcmp.eq.f32.partialorder %v324, 0.0
      %v350 = vsel %vm349, 1, 0
      %v351 = vperm.slane %v350, 0
      %vm352 = vcmp.eq.s32.totalorder %v351, 1
      %v353 = vsel %vm352, -1e-20, %v346
      %v354 = vmul.f32 %v353, 0.35355338
      %v355 = vsel %vm329, %v354, -inf
      %356 = vmax.xlane.f32.xlu0 %v355
      %v357 = vpop.xlane.xlu0 %356
      %v358 = vsub.f32 %v354, %v357
      %v359 = vmul.f32 %v358, 1.442695
      %v360 = vpow.pop %v359
      %v361 = vsel %vm329, %v360, 0.0
      %362 = vadd.xlane.f32.xlu0 %v361
      %v363 = vpop.xlane.xlu0 %362
      %v364 = vrcp.pop %v363
      %v365 = vmul.f32 %v360, %v364
      %v366 = vpack.c.bf16 %v365, %v365
      %367 = vrot.lane.b32.xlu0 %v325, 64
      %v368 = vpop.permute.xlu0 %367
      %v370 = vsel %vm329, %v366, 0
      %vm372 = vcmask 1043456
      %v374 = vsel %vm372, %v368, 0
      %376 = vmatpush.bf16.msra.mxu0 0
      %377 = vmatpush.bf16.msra.mxu0 0
      %378 = vmatpush.bf16.msra.mxu0 0
      %379 = vmatpush.bf16.msra.mxu0 0
      %380 = vmatpush.bf16.msra.mxu0 0
      %381 = vmatpush.bf16.msra.mxu0 0
      %382 = vmatpush.bf16.msra.mxu0 0
      %383 = vmatpush.bf16.msra.mxu0 %v374
      %384 = vmatmul.bf16.gmra.mxu0 %v370
      %v385 = vpop.f32.mrf.mxu0
      %v386 = vadd.f32 0.0, %v385
      %v387 = vpop.f32.mrf.mxu0
      %388 = vdwg.mxu0
      %v389 = vpack.c.bf16 %v386, %v386
      %v390 = vld [vmem:[%s3] sm:$0xf]
      %391 = vrot.lane.b32.xlu0 %v325, 120
      %v392 = vpop.permute.xlu0 %391
      %393 = vrot.lane.b32.xlu0 %v325, 88
      %v394 = vpop.permute.xlu0 %393
      %v396 = vsel %vm329, %v392, 0
      %v399 = vsel %vm329, %v394, 0
      %401 = vmatpush.bf16.xpose.msra.mxu0 0
      %402 = vmatpush.bf16.xpose.msra.mxu0 0
      %403 = vmatpush.bf16.xpose.msra.mxu0 0
      %404 = vmatpush.bf16.xpose.msra.mxu0 0
      %405 = vmatpush.bf16.xpose.msra.mxu0 0
      %406 = vmatpush.bf16.xpose.msra.mxu0 0
      %407 = vmatpush.bf16.xpose.msra.mxu0 0
      %408 = vmatpush.bf16.xpose.msra.mxu0 %v399
      %409 = vmatmul.bf16.gmra.mxu0 %v396
      %v410 = vpop.f32.mrf.mxu0
      %v411 = vadd.f32 0.0, %v410
      %v412 = vpop.f32.mrf.mxu0
      %413 = vdwg.mxu0
      %v414 = vsel %vm352, -1e-20, %v411
      %v415 = vmul.f32 %v414, 0.35355338
      %v416 = vsel %vm329, %v415, -inf
      %417 = vmax.xlane.f32.xlu0 %v416
      %v418 = vpop.xlane.xlu0 %417
      %v419 = vsub.f32 %v415, %v418
      %v420 = vmul.f32 %v419, 1.442695
      %v421 = vpow.pop %v420
      %v422 = vsel %vm329, %v421, 0.0
      %423 = vadd.xlane.f32.xlu0 %v422
      %v424 = vpop.xlane.xlu0 %423
      %v425 = vrcp.pop %v424
      %v426 = vmul.f32 %v421, %v425
      %v427 = vpack.c.bf16 %v426, %v426
      %428 = vrot.lane.b32.xlu0 %v325, 56
      %v429 = vpop.permute.xlu0 %428
      %v431 = vsel %vm329, %v427, 0
      %v434 = vsel %vm372, %v429, 0
      %436 = vmatpush.bf16.msra.mxu0 0
      %437 = vmatpush.bf16.msra.mxu0 0
      %438 = vmatpush.bf16.msra.mxu0 0
      %439 = vmatpush.bf16.msra.mxu0 0
      %440 = vmatpush.bf16.msra.mxu0 0
      %441 = vmatpush.bf16.msra.mxu0 0
      %442 = vmatpush.bf16.msra.mxu0 0
      %443 = vmatpush.bf16.msra.mxu0 %v434
      %444 = vmatmul.bf16.gmra.mxu0 %v431
      %v445 = vpop.f32.mrf.mxu0
      %v446 = vadd.f32 0.0, %v445
      %v447 = vpop.f32.mrf.mxu0
      %448 = vdwg.mxu0
      %v449 = vpack.c.bf16 %v446, %v446
      %v450 = vld [vmem:[%s3 + $0x4] sm:$0xf]
      %v452 = vsel %vm329, %v449, 0
      %v455 = vsel %vm372, %v450, 0
      %457 = vmatpush.bf16.msra.mxu0 0
      %458 = vmatpush.bf16.msra.mxu0 0
      %459 = vmatpush.bf16.msra.mxu0 0
      %460 = vmatpush.bf16.msra.mxu0 0
      %461 = vmatpush.bf16.msra.mxu0 0
      %462 = vmatpush.bf16.msra.mxu0 0
      %463 = vmatpush.bf16.msra.mxu0 0
      %464 = vmatpush.bf16.msra.mxu0 %v455
      %465 = vmatmul.bf16.gmra.mxu0 %v452
      %v466 = vpop.f32.mrf.mxu0
      %v467 = vadd.f32 0.0, %v466
      %v468 = vpop.f32.mrf.mxu0
      %469 = vdwg.mxu0
      %v471 = vsel %vm329, %v389, 0
      %v474 = vsel %vm372, %v390, 0
      %476 = vmatpush.bf16.msra.mxu0 0
      %477 = vmatpush.bf16.msra.mxu0 0
      %478 = vmatpush.bf16.msra.mxu0 0
      %479 = vmatpush.bf16.msra.mxu0 0
      %480 = vmatpush.bf16.msra.mxu0 0
      %481 = vmatpush.bf16.msra.mxu0 0
      %482 = vmatpush.bf16.msra.mxu0 0
      %483 = vmatpush.bf16.msra.mxu0 %v474
      %484 = vmatmul.bf16.gmra.mxu0 %v471
      %v485 = vpop.f32.mrf.mxu0
      %v486 = vadd.f32 %v467, %v485
      %v487 = vpop.f32.mrf.mxu0
      %488 = vdwg.mxu0
      %489 = vrot.lane.b32.xlu0 %v325, 112
      %v490 = vpop.permute.xlu0 %489
      %491 = vrot.lane.b32.xlu0 %v325, 80
      %v492 = vpop.permute.xlu0 %491
      %v494 = vsel %vm329, %v490, 0
      %v497 = vsel %vm329, %v492, 0
      %499 = vmatpush.bf16.xpose.msra.mxu0 0
      %500 = vmatpush.bf16.xpose.msra.mxu0 0
      %501 = vmatpush.bf16.xpose.msra.mxu0 0
      %502 = vmatpush.bf16.xpose.msra.mxu0 0
      %503 = vmatpush.bf16.xpose.msra.mxu0 0
      %504 = vmatpush.bf16.xpose.msra.mxu0 0
      %505 = vmatpush.bf16.xpose.msra.mxu0 0
      %506 = vmatpush.bf16.xpose.msra.mxu0 %v497
      %507 = vmatmul.bf16.gmra.mxu0 %v494
      %v508 = vpop.f32.mrf.mxu0
      %v509 = vadd.f32 0.0, %v508
      %v510 = vpop.f32.mrf.mxu0
      %511 = vdwg.mxu0
      %v512 = vsel %vm352, -1e-20, %v509
      %v513 = vmul.f32 %v512, 0.35355338
      %v514 = vsel %vm329, %v513, -inf
      %515 = vmax.xlane.f32.xlu0 %v514
      %v516 = vpop.xlane.xlu0 %515
      %v517 = vsub.f32 %v513, %v516
      %v518 = vmul.f32 %v517, 1.442695
      %v519 = vpow.pop %v518
      %v520 = vsel %vm329, %v519, 0.0
      %521 = vadd.xlane.f32.xlu0 %v520
      %v522 = vpop.xlane.xlu0 %521
      %v523 = vrcp.pop %v522
      %v524 = vmul.f32 %v519, %v523
      %v525 = vpack.c.bf16 %v524, %v524
      %526 = vrot.lane.b32.xlu0 %v325, 48
      %v527 = vpop.permute.xlu0 %526
      %v529 = vsel %vm329, %v525, 0
      %v532 = vsel %vm372, %v527, 0
      %534 = vmatpush.bf16.msra.mxu0 0
      %535 = vmatpush.bf16.msra.mxu0 0
      %536 = vmatpush.bf16.msra.mxu0 0
      %537 = vmatpush.bf16.msra.mxu0 0
      %538 = vmatpush.bf16.msra.mxu0 0
      %539 = vmatpush.bf16.msra.mxu0 0
      %540 = vmatpush.bf16.msra.mxu0 0
      %541 = vmatpush.bf16.msra.mxu0 %v532
      %542 = vmatmul.bf16.gmra.mxu0 %v529
      %v543 = vpop.f32.mrf.mxu0
      %v544 = vadd.f32 0.0, %v543
      %v545 = vpop.f32.mrf.mxu0
      %546 = vdwg.mxu0
      %v547 = vpack.c.bf16 %v544, %v544
      %v548 = vld [vmem:[%s3 + $0x8] sm:$0xf]
      %v550 = vsel %vm329, %v547, 0
      %v553 = vsel %vm372, %v548, 0
      %555 = vmatpush.bf16.msra.mxu0 0
      %556 = vmatpush.bf16.msra.mxu0 0
      %557 = vmatpush.bf16.msra.mxu0 0
      %558 = vmatpush.bf16.msra.mxu0 0
      %559 = vmatpush.bf16.msra.mxu0 0
      %560 = vmatpush.bf16.msra.mxu0 0
      %561 = vmatpush.bf16.msra.mxu0 0
      %562 = vmatpush.bf16.msra.mxu0 %v553
      %563 = vmatmul.bf16.gmra.mxu0 %v550
      %v564 = vpop.f32.mrf.mxu0
      %v565 = vadd.f32 0.0, %v564
      %v566 = vpop.f32.mrf.mxu0
      %567 = vdwg.mxu0
      %v568 = vadd.f32 %v486, %v565
      %569 = vrot.lane.b32.xlu0 %v325, 104
      %v570 = vpop.permute.xlu0 %569
      %571 = vrot.lane.b32.xlu0 %v325, 72
      %v572 = vpop.permute.xlu0 %571
      %v574 = vsel %vm329, %v570, 0
      %v577 = vsel %vm329, %v572, 0
      %579 = vmatpush.bf16.xpose.msra.mxu0 0
      %580 = vmatpush.bf16.xpose.msra.mxu0 0
      %581 = vmatpush.bf16.xpose.msra.mxu0 0
      %582 = vmatpush.bf16.xpose.msra.mxu0 0
      %583 = vmatpush.bf16.xpose.msra.mxu0 0
      %584 = vmatpush.bf16.xpose.msra.mxu0 0
      %585 = vmatpush.bf16.xpose.msra.mxu0 0
      %586 = vmatpush.bf16.xpose.msra.mxu0 %v577
      %587 = vmatmul.bf16.gmra.mxu0 %v574
      %v588 = vpop.f32.mrf.mxu0
      %v589 = vadd.f32 0.0, %v588
      %v590 = vpop.f32.mrf.mxu0
      %591 = vdwg.mxu0
      %v592 = vsel %vm352, -1e-20, %v589
      %v593 = vmul.f32 %v592, 0.35355338
      %v594 = vsel %vm329, %v593, -inf
      %595 = vmax.xlane.f32.xlu0 %v594
      %v596 = vpop.xlane.xlu0 %595
      %v597 = vsub.f32 %v593, %v596
      %v598 = vmul.f32 %v597, 1.442695
      %v599 = vpow.pop %v598
      %v600 = vsel %vm329, %v599, 0.0
      %601 = vadd.xlane.f32.xlu0 %v600
      %v602 = vpop.xlane.xlu0 %601
      %v603 = vrcp.pop %v602
      %v604 = vmul.f32 %v599, %v603
      %v605 = vpack.c.bf16 %v604, %v604
      %606 = vrot.lane.b32.xlu0 %v325, 40
      %v607 = vpop.permute.xlu0 %606
      %v609 = vsel %vm329, %v605, 0
      %v612 = vsel %vm372, %v607, 0
      %614 = vmatpush.bf16.msra.mxu0 0
      %615 = vmatpush.bf16.msra.mxu0 0
      %616 = vmatpush.bf16.msra.mxu0 0
      %617 = vmatpush.bf16.msra.mxu0 0
      %618 = vmatpush.bf16.msra.mxu0 0
      %619 = vmatpush.bf16.msra.mxu0 0
      %620 = vmatpush.bf16.msra.mxu0 0
      %621 = vmatpush.bf16.msra.mxu0 %v612
      %622 = vmatmul.bf16.gmra.mxu0 %v609
      %v623 = vpop.f32.mrf.mxu0
      %v624 = vadd.f32 0.0, %v623
      %v625 = vpop.f32.mrf.mxu0
      %626 = vdwg.mxu0
      %v627 = vpack.c.bf16 %v624, %v624
      %v628 = vld [vmem:[%s3 + $0xc] sm:$0xf]
      %v630 = vsel %vm329, %v627, 0
      %v633 = vsel %vm372, %v628, 0
      %635 = vmatpush.bf16.msra.mxu0 0
      %636 = vmatpush.bf16.msra.mxu0 0
      %637 = vmatpush.bf16.msra.mxu0 0
      %638 = vmatpush.bf16.msra.mxu0 0
      %639 = vmatpush.bf16.msra.mxu0 0
      %640 = vmatpush.bf16.msra.mxu0 0
      %641 = vmatpush.bf16.msra.mxu0 0
      %642 = vmatpush.bf16.msra.mxu0 %v633
      %643 = vmatmul.bf16.gmra.mxu0 %v630
      %v644 = vpop.f32.mrf.mxu0
      %v645 = vadd.f32 0.0, %v644
      %v646 = vpop.f32.mrf.mxu0
      %647 = vdwg.mxu0
      %v648 = vadd.f32 %v568, %v645
      %v649 = vld [vmem:[%s4] sm:$0x1]
      %v651 = vperm.slane %v649, 0
      %v653 = vadd.f32 %v648, %v651
      %v654 = vadd.f32 %v653, %v289
      %v655 = vsel %vm307, %v654, 0.0
      %656 = vadd.xlane.f32.xlu0 %v655
      %v657 = vpop.xlane.xlu0 %656
      %v658 = vrcp.pop 32.0
      %v659 = vmul.f32 32.0, %v658
      %v660 = vsub.f32 1.0, %v659
      %v661 = vmul.f32 %v658, %v660
      %v662 = vadd.f32 %v658, %v661
      %vm663 = vweird.f32 %v658
      %v664 = vsel %vm663, %v658, %v662
      %v665 = vmul.f32 %v657, %v664
      %v666 = vsub.f32 %v654, %v665
      %v667 = vmul.f32 %v666, %v666
      %v668 = vsel %vm307, %v667, 0.0
      %669 = vadd.xlane.f32.xlu0 %v668
      %v670 = vpop.xlane.xlu0 %669
      %v671 = vmul.f32 %v670, %v664
      %v672 = vadd.f32 %v671, 1e-05
      %v673 = vrsqrt.pop %v672
      %v674 = vmul.f32 %v673, %v672
      %v675 = vmul.f32 %v674, %v673
      %v676 = vmul.f32 0.5, %v675
      %v677 = vsub.f32 1.5, %v676
      %v678 = vmul.f32 %v673, %v677
      %vm679 = vweird.f32 %v672
      %vm680 = vweird.f32 %v673
      %vm681 = vmor %vm679, %vm680
      %v682 = vsel %vm681, %v673, %v678
      %v683 = vmul.f32 %v666, %v682
      %v684 = vld [vmem:[%s5] sm:$0x1]
      %v686 = vperm.slane %v684, 0
      %v688 = vmul.f32 %v683, %v686
      %v689 = vld [vmem:[%s6] sm:$0x1]
      %v691 = vperm.slane %v689, 0
      %v693 = vadd.f32 %v688, %v691
      %694 = vst.msk [vmem:[%s287] sm:$0xff] %vm307, %v693
      %p695 = scmp.lt.s32.totalorder %s18, 1
      %s696 = scalar_select %p695, %s18, 1
      %s697 = smul.addr %s696, 8
      %s698 = scalar_lea.vmem %s7, %s697
      // Predicated region
      $region49: #{_lambda_.4} parent=47 // pred_check
        %p699 = pneg %p193
      $region50: #{_lambda_.4} parent=47 // pred_check_branch
        %701 = sbr.rel (%p699) target = $region52
      $region51: #{_lambda_.4} parent=47 // pred_region
        _
      $region52: #{_lambda_.4} parent=47 // pred_fallthru
        _
    $region48: #{_lambda_.4} parent=5 // pred_fallthru
      _
    %p702 = scmp.le.s32.totalorder 2, %s13
    // Predicated region
    $region53: #{_lambda_.4} parent=5 // pred_check
      %p703 = pneg %p702
    $region54: #{_lambda_.4} parent=5 // pred_check_branch
      %705 = sbr.rel (%p703) target = $region56
    $region55: #{_lambda_.4} parent=5 // pred_region
      %s706 = ssub.s32 %s13, 2
      // Predicated region
      $region57: #{_lambda_.4} parent=55 // pred_check
        %p707 = pneg %p199
      $region58: #{_lambda_.4} parent=55 // pred_check_branch
        %709 = sbr.rel (%p707) target = $region60
      $region59: #{_lambda_.4} parent=55 // pred_region
        %p710 = scmp.lt.s32.totalorder %s19, 1
        %s711 = scalar_select %p710, %s19, 1
        %s712 = smul.addr %s711, 8
        %s713 = scalar_lea.vmem %s7, %s712
      $region60: #{_lambda_.4} parent=55 // pred_fallthru
        _
    $region56: #{_lambda_.4} parent=5 // pred_fallthru
      _
  $region6: #{_lambda_.4} parent=0 // loop_footer
    %s17 = sadd.s32 1, %s13
  $region7: #{_lambda_.4} parent=0 // loop_footer_branch
    %12 = sbr.rel target = $region3
  $region8: #{_lambda_.4} parent=0 // loop_exit
    _

</llo_original>
